<compile_context>
chip_gen: v7x
topology: tpu7x:2x2x1
jax: 0.10.0
libtpu: 0.0.40
codegen_flags: <defaults>
</compile_context>

<pallas_src>
import functools

import jax
import jax.numpy as jnp
from jax import lax
from jax.experimental import pallas as pl
from jax.experimental.pallas import tpu as pltpu


def _round_up(n, m):
    return ((n + m - 1) // m) * m


def fm_kernel(bias_ref, idx_ref, tab_ref, out_ref, mh_ref,
              *, slot_sizes, slot_offsets, embed_size):
    # bias_ref: SMEM (1,) f32
    # idx_ref:  VMEM (F, TILE_B) int32      -- raw per-field indices, batch on lanes
    # tab_ref:  VMEM (ROWS_PAD, V_slot) f32 -- combined transposed tables (resident)
    # out_ref:  VMEM (1, TILE_B) f32        -- lane-dense output
    # mh_ref:   VMEM (V_slot, TILE_B) f32   -- per-tile multi-hot scratch
    tile_b = idx_ref.shape[1]

    # Build the multi-hot: each field writes its own 8-aligned slot of rows, so
    # the compare cost is ~sum(vocab) * TILE_B (not F * V_slot * TILE_B) and the
    # whole scratch is rewritten every grid step (no stale rows).
    for f, (off, slot) in enumerate(zip(slot_offsets, slot_sizes)):
        local_iota = lax.broadcasted_iota(jnp.int32, (slot, tile_b), 0)
        idx_f = idx_ref[f:f + 1, :]                                     # (1, TILE_B)
        mh_ref[off:off + slot, :] = (local_iota == idx_f).astype(jnp.float32)

    # One MXU matmul gathers and field-reduces everything at once:
    #   rows 0..E-1 : sum_f emb_f(x)          (sum_emb,   [E, TILE_B])
    #   row  E      : sum_f sum_e emb_f(x)^2  (sum_of_sq, [1, TILE_B])
    #   row  E+1    : sum_f first_order_f(x)  (first,     [1, TILE_B])
    res = jnp.dot(tab_ref[...], mh_ref[...],
                  preferred_element_type=jnp.float32,
                  precision=lax.Precision.HIGHEST)                      # (ROWS_PAD, TILE_B)

    e = embed_size
    sum_emb = res[0:e, :]                                               # (E, TILE_B)
    sum_of_sq = res[e:e + 1, :]                                         # (1, TILE_B)
    first = res[e + 1:e + 2, :]                                         # (1, TILE_B)

    sq_of_sum = jnp.sum(sum_emb * sum_emb, axis=0, keepdims=True)       # (1, TILE_B)
    second = 0.5 * (sq_of_sum - sum_of_sq)
    out = bias_ref[0] + first + second
    out_ref[...] = jnp.clip(out, 0.0, 1.0)


def fm_forward_pallas(x, fm_bias, fo_tables, so_tables, tile_b=4096):
    """x: [B, F] int32 per-field indices. Returns [B] float32 (clamped FM logits)."""
    B, F = x.shape
    E = so_tables[0].shape[1]
    sizes = [int(t.shape[0]) for t in so_tables]

    # --- per-field 8-aligned vocab slots; total padded to a lane multiple -----
    slots = [_round_up(s, 8) for s in sizes]
    v_slot = _round_up(sum(slots), 128)
    slots[-1] += v_slot - sum(slots)            # last slot absorbs the lane padding
    offs, acc = [], 0
    for s in slots:
        offs.append(acc)
        acc += s

    # --- combined, transposed lookup table (tiny; resident in VMEM) -----------
    rows_pad = _round_up(E + 2, 8)
    tab = jnp.zeros((rows_pad, v_slot), jnp.float32)
    for f in range(F):
        so_t = so_tables[f].astype(jnp.float32)          # [size_f, E]
        fo_t = fo_tables[f].astype(jnp.float32)          # [size_f, 1]
        off, sz = offs[f], sizes[f]
        tab = tab.at[0:E, off:off + sz].set(so_t.T)
        tab = tab.at[E, off:off + sz].set(jnp.sum(so_t * so_t, axis=1))
        tab = tab.at[E + 1, off:off + sz].set(fo_t[:, 0])

    # --- batch tiling: lane-dense tiles; >=2 grid steps when B allows (v7x
    #     megacore); one-hot scratch capped at ~8 MiB (v5e 16 MiB scoped VMEM,
    #     v7x 64 MiB physical VMEM both comfortable) -------------------------
    tile = _round_up(min(tile_b, max(128, (B + 1) // 2)), 128)
    max_tile_vmem = max(128, (8 * 1024 * 1024 // (v_slot * 4)) // 128 * 128)
    tile = min(tile, max_tile_vmem)
    B_pad = _round_up(B, tile)
    num_tiles = B_pad // tile

    # Only layout plumbing left in the wrapper: pad + transpose the int32
    # indices so batch sits on the lane axis (52 B/elem, no embedding traffic).
    idx = jnp.pad(x.astype(jnp.int32), ((0, B_pad - B), (0, 0))).T      # [F, B_pad]
    bias = fm_bias.astype(jnp.float32).reshape((1,))

    kernel = functools.partial(
        fm_kernel, slot_sizes=tuple(slots), slot_offsets=tuple(offs), embed_size=E)

    out = pl.pallas_call(
        kernel,
        out_shape=jax.ShapeDtypeStruct((1, B_pad), jnp.float32),
        grid=(num_tiles,),
        in_specs=[
            pl.BlockSpec(memory_space=pltpu.MemorySpace.SMEM),          # bias scalar
            pl.BlockSpec((F, tile), lambda i: (0, i)),                  # indices [F, TILE_B]
            pl.BlockSpec((rows_pad, v_slot), lambda i: (0, 0)),         # resident table
        ],
        out_specs=pl.BlockSpec((1, tile), lambda i: (0, i)),            # lane-dense output
        scratch_shapes=[pltpu.VMEM((v_slot, tile), jnp.float32)],       # multi-hot scratch
        compiler_params=pltpu.CompilerParams(
            dimension_semantics=("parallel",)),
    )(bias, idx, tab)
    return out.reshape(-1)[:B]


def fm_forward_ref(x, fm_bias, fo_tables, so_tables):
    """Pure-JAX reference mirroring the PyTorch forward (pretrain path)."""
    B, F = x.shape
    fo_arr = [fo_tables[i][x[:, i]] for i in range(F)]          # each [B, 1]
    so_arr = [so_tables[i][x[:, i]] for i in range(F)]          # each [B, E]
    first = sum(fo_arr).reshape(-1)                             # [B]
    sum_emb = sum(so_arr)                                       # [B, E]
    sum_square = sum_emb * sum_emb
    square_sum = sum(e * e for e in so_arr)
    second = jnp.sum(0.5 * (sum_square - square_sum), axis=1)   # [B]
    return jnp.clip(fm_bias[0] + first + second, 0.0, 1.0)


if __name__ == "__main__":
    key = jax.random.PRNGKey(0)

    # Small, deterministic config consistent with the module's __init__:
    # 13 categorical fields (cat_cols), per-field vocab sizes, embed_size.
    feature_sizes = [11, 7, 13, 5, 9, 6, 8, 10, 12, 4, 15, 14, 7]
    F = len(feature_sizes)
    E = 8          # embed_size
    B = 8          # batch

    keys = jax.random.split(key, 2 * F + 2)
    fm_bias = jax.random.normal(keys[0], (1,), dtype=jnp.float32)
    fo_tables = [
        jax.random.normal(keys[1 + i], (fs, 1), dtype=jnp.float32)
        for i, fs in enumerate(feature_sizes)
    ]
    so_tables = [
        jax.random.normal(keys[1 + F + i], (fs, E), dtype=jnp.float32)
        for i, fs in enumerate(feature_sizes)
    ]

    # Integer index input x: [B, F], each column bounded by its vocab size.
    xcols = []
    kidx = keys[-1]
    for i, fs in enumerate(feature_sizes):
        kidx, sub = jax.random.split(kidx)
        xcols.append(jax.random.randint(sub, (B,), 0, fs, dtype=jnp.int32))
    x = jnp.stack(xcols, axis=1)                                 # [B, F] int32

    out = fm_forward_pallas(x, fm_bias, fo_tables, so_tables)
    out = jax.block_until_ready(out)

    ref = fm_forward_ref(x, fm_bias, fo_tables, so_tables)
    assert out.shape == (B,)
    # f32 everywhere (table resident in VMEM, HIGHEST-precision MXU passes);
    # tolerance only covers summation-order differences.
    assert jnp.allclose(out, ref, atol=2e-4, rtol=2e-4), (out, ref)

    print("KERNEL_OK")
</pallas_src>

<mosaic_0001>
module attributes {stable_mosaic.version = 11 : i64} {
  func.func @fm_kernel(%arg0: i32, %arg1: memref<1xf32, #tpu.memory_space<smem>>, %arg2: memref<13x128xi32, #tpu.memory_space<vmem>>, %arg3: memref<16x256xf32, #tpu.memory_space<vmem>>, %arg4: memref<1x128xf32, #tpu.memory_space<vmem>>, %arg5: memref<256x128xf32, #tpu.memory_space<vmem>>) attributes {dimension_semantics = [#tpu.dimension_semantics<parallel>], iteration_bounds = array<i64: 1>, scalar_prefetch = 0 : i64, scratch_operands = 1 : i64, tpu.core_type = #tpu.core_type<tc>, window_params = [{transform_indices = @transform_0, window_bounds = array<i64: 1>}, {transform_indices = @transform_1, window_bounds = array<i64: 13, 128>}, {pipeline_mode = #tpu.pipeline_mode<synchronous>, transform_indices = @transform_2, window_bounds = array<i64: 16, 256>}, {transform_indices = @transform_3, window_bounds = array<i64: 1, 128>}]} {
    %0 = tpu.iota {dimensions = array<i32: 0>} : vector<16x128xi32>
    %c0 = arith.constant 0 : index
    %c0_0 = arith.constant 0 : index
    %1 = vector.load %arg2[%c0, %c0_0] : memref<13x128xi32, #tpu.memory_space<vmem>>, vector<1x128xi32>
    %2 = vector.broadcast %1 : vector<1x128xi32> to vector<16x128xi32>
    %3 = arith.cmpi eq, %0, %2 : vector<16x128xi32>
    %4 = arith.extui %3 : vector<16x128xi1> to vector<16x128xi32>
    %5 = arith.sitofp %4 : vector<16x128xi32> to vector<16x128xf32>
    %c0_1 = arith.constant 0 : index
    %c0_2 = arith.constant 0 : index
    %6 = vector.load %arg5[%c0_1, %c0_2] : memref<256x128xf32, #tpu.memory_space<vmem>>, vector<16x128xf32>
    tpu.vector_store %arg5[%c0_1, %c0_2], %5 {strides = array<i32>} : memref<256x128xf32, #tpu.memory_space<vmem>>, vector<16x128xf32>,
    %7 = tpu.iota {dimensions = array<i32: 0>} : vector<8x128xi32>
    %c1 = arith.constant 1 : index
    %c0_3 = arith.constant 0 : index
    %8 = vector.load %arg2[%c1, %c0_3] : memref<13x128xi32, #tpu.memory_space<vmem>>, vector<1x128xi32>
    %9 = vector.broadcast %8 : vector<1x128xi32> to vector<8x128xi32>
    %10 = arith.cmpi eq, %7, %9 : vector<8x128xi32>
    %11 = arith.extui %10 : vector<8x128xi1> to vector<8x128xi32>
    %12 = arith.sitofp %11 : vector<8x128xi32> to vector<8x128xf32>
    %c16 = arith.constant 16 : index
    %c0_4 = arith.constant 0 : index
    %13 = vector.load %arg5[%c16, %c0_4] : memref<256x128xf32, #tpu.memory_space<vmem>>, vector<8x128xf32>
    tpu.vector_store %arg5[%c16, %c0_4], %12 {strides = array<i32>} : memref<256x128xf32, #tpu.memory_space<vmem>>, vector<8x128xf32>,
    %14 = tpu.iota {dimensions = array<i32: 0>} : vector<16x128xi32>
    %c2 = arith.constant 2 : index
    %c0_5 = arith.constant 0 : index
    %15 = vector.load %arg2[%c2, %c0_5] : memref<13x128xi32, #tpu.memory_space<vmem>>, vector<1x128xi32>
    %16 = vector.broadcast %15 : vector<1x128xi32> to vector<16x128xi32>
    %17 = arith.cmpi eq, %14, %16 : vector<16x128xi32>
    %18 = arith.extui %17 : vector<16x128xi1> to vector<16x128xi32>
    %19 = arith.sitofp %18 : vector<16x128xi32> to vector<16x128xf32>
    %c24 = arith.constant 24 : index
    %c0_6 = arith.constant 0 : index
    %20 = vector.load %arg5[%c24, %c0_6] : memref<256x128xf32, #tpu.memory_space<vmem>>, vector<16x128xf32>
    tpu.vector_store %arg5[%c24, %c0_6], %19 {strides = array<i32>} : memref<256x128xf32, #tpu.memory_space<vmem>>, vector<16x128xf32>,
    %21 = tpu.iota {dimensions = array<i32: 0>} : vector<8x128xi32>
    %c3 = arith.constant 3 : index
    %c0_7 = arith.constant 0 : index
    %22 = vector.load %arg2[%c3, %c0_7] : memref<13x128xi32, #tpu.memory_space<vmem>>, vector<1x128xi32>
    %23 = vector.broadcast %22 : vector<1x128xi32> to vector<8x128xi32>
    %24 = arith.cmpi eq, %21, %23 : vector<8x128xi32>
    %25 = arith.extui %24 : vector<8x128xi1> to vector<8x128xi32>
    %26 = arith.sitofp %25 : vector<8x128xi32> to vector<8x128xf32>
    %c40 = arith.constant 40 : index
    %c0_8 = arith.constant 0 : index
    %27 = vector.load %arg5[%c40, %c0_8] : memref<256x128xf32, #tpu.memory_space<vmem>>, vector<8x128xf32>
    tpu.vector_store %arg5[%c40, %c0_8], %26 {strides = array<i32>} : memref<256x128xf32, #tpu.memory_space<vmem>>, vector<8x128xf32>,
    %28 = tpu.iota {dimensions = array<i32: 0>} : vector<16x128xi32>
    %c4 = arith.constant 4 : index
    %c0_9 = arith.constant 0 : index
    %29 = vector.load %arg2[%c4, %c0_9] : memref<13x128xi32, #tpu.memory_space<vmem>>, vector<1x128xi32>
    %30 = vector.broadcast %29 : vector<1x128xi32> to vector<16x128xi32>
    %31 = arith.cmpi eq, %28, %30 : vector<16x128xi32>
    %32 = arith.extui %31 : vector<16x128xi1> to vector<16x128xi32>
    %33 = arith.sitofp %32 : vector<16x128xi32> to vector<16x128xf32>
    %c48 = arith.constant 48 : index
    %c0_10 = arith.constant 0 : index
    %34 = vector.load %arg5[%c48, %c0_10] : memref<256x128xf32, #tpu.memory_space<vmem>>, vector<16x128xf32>
    tpu.vector_store %arg5[%c48, %c0_10], %33 {strides = array<i32>} : memref<256x128xf32, #tpu.memory_space<vmem>>, vector<16x128xf32>,
    %35 = tpu.iota {dimensions = array<i32: 0>} : vector<8x128xi32>
    %c5 = arith.constant 5 : index
    %c0_11 = arith.constant 0 : index
    %36 = vector.load %arg2[%c5, %c0_11] : memref<13x128xi32, #tpu.memory_space<vmem>>, vector<1x128xi32>
    %37 = vector.broadcast %36 : vector<1x128xi32> to vector<8x128xi32>
    %38 = arith.cmpi eq, %35, %37 : vector<8x128xi32>
    %39 = arith.extui %38 : vector<8x128xi1> to vector<8x128xi32>
    %40 = arith.sitofp %39 : vector<8x128xi32> to vector<8x128xf32>
    %c64 = arith.constant 64 : index
    %c0_12 = arith.constant 0 : index
    %41 = vector.load %arg5[%c64, %c0_12] : memref<256x128xf32, #tpu.memory_space<vmem>>, vector<8x128xf32>
    tpu.vector_store %arg5[%c64, %c0_12], %40 {strides = array<i32>} : memref<256x128xf32, #tpu.memory_space<vmem>>, vector<8x128xf32>,
    %42 = tpu.iota {dimensions = array<i32: 0>} : vector<8x128xi32>
    %c6 = arith.constant 6 : index
    %c0_13 = arith.constant 0 : index
    %43 = vector.load %arg2[%c6, %c0_13] : memref<13x128xi32, #tpu.memory_space<vmem>>, vector<1x128xi32>
    %44 = vector.broadcast %43 : vector<1x128xi32> to vector<8x128xi32>
    %45 = arith.cmpi eq, %42, %44 : vector<8x128xi32>
    %46 = arith.extui %45 : vector<8x128xi1> to vector<8x128xi32>
    %47 = arith.sitofp %46 : vector<8x128xi32> to vector<8x128xf32>
    %c72 = arith.constant 72 : index
    %c0_14 = arith.constant 0 : index
    %48 = vector.load %arg5[%c72, %c0_14] : memref<256x128xf32, #tpu.memory_space<vmem>>, vector<8x128xf32>
    tpu.vector_store %arg5[%c72, %c0_14], %47 {strides = array<i32>} : memref<256x128xf32, #tpu.memory_space<vmem>>, vector<8x128xf32>,
    %49 = tpu.iota {dimensions = array<i32: 0>} : vector<16x128xi32>
    %c7 = arith.constant 7 : index
    %c0_15 = arith.constant 0 : index
    %50 = vector.load %arg2[%c7, %c0_15] : memref<13x128xi32, #tpu.memory_space<vmem>>, vector<1x128xi32>
    %51 = vector.broadcast %50 : vector<1x128xi32> to vector<16x128xi32>
    %52 = arith.cmpi eq, %49, %51 : vector<16x128xi32>
    %53 = arith.extui %52 : vector<16x128xi1> to vector<16x128xi32>
    %54 = arith.sitofp %53 : vector<16x128xi32> to vector<16x128xf32>
    %c80 = arith.constant 80 : index
    %c0_16 = arith.constant 0 : index
    %55 = vector.load %arg5[%c80, %c0_16] : memref<256x128xf32, #tpu.memory_space<vmem>>, vector<16x128xf32>
    tpu.vector_store %arg5[%c80, %c0_16], %54 {strides = array<i32>} : memref<256x128xf32, #tpu.memory_space<vmem>>, vector<16x128xf32>,
    %56 = tpu.iota {dimensions = array<i32: 0>} : vector<16x128xi32>
    %c8 = arith.constant 8 : index
    %c0_17 = arith.constant 0 : index
    %57 = vector.load %arg2[%c8, %c0_17] : memref<13x128xi32, #tpu.memory_space<vmem>>, vector<1x128xi32>
    %58 = vector.broadcast %57 : vector<1x128xi32> to vector<16x128xi32>
    %59 = arith.cmpi eq, %56, %58 : vector<16x128xi32>
    %60 = arith.extui %59 : vector<16x128xi1> to vector<16x128xi32>
    %61 = arith.sitofp %60 : vector<16x128xi32> to vector<16x128xf32>
    %c96 = arith.constant 96 : index
    %c0_18 = arith.constant 0 : index
    %62 = vector.load %arg5[%c96, %c0_18] : memref<256x128xf32, #tpu.memory_space<vmem>>, vector<16x128xf32>
    tpu.vector_store %arg5[%c96, %c0_18], %61 {strides = array<i32>} : memref<256x128xf32, #tpu.memory_space<vmem>>, vector<16x128xf32>,
    %63 = tpu.iota {dimensions = array<i32: 0>} : vector<8x128xi32>
    %c9 = arith.constant 9 : index
    %c0_19 = arith.constant 0 : index
    %64 = vector.load %arg2[%c9, %c0_19] : memref<13x128xi32, #tpu.memory_space<vmem>>, vector<1x128xi32>
    %65 = vector.broadcast %64 : vector<1x128xi32> to vector<8x128xi32>
    %66 = arith.cmpi eq, %63, %65 : vector<8x128xi32>
    %67 = arith.extui %66 : vector<8x128xi1> to vector<8x128xi32>
    %68 = arith.sitofp %67 : vector<8x128xi32> to vector<8x128xf32>
    %c112 = arith.constant 112 : index
    %c0_20 = arith.constant 0 : index
    %69 = vector.load %arg5[%c112, %c0_20] : memref<256x128xf32, #tpu.memory_space<vmem>>, vector<8x128xf32>
    tpu.vector_store %arg5[%c112, %c0_20], %68 {strides = array<i32>} : memref<256x128xf32, #tpu.memory_space<vmem>>, vector<8x128xf32>,
    %70 = tpu.iota {dimensions = array<i32: 0>} : vector<16x128xi32>
    %c10 = arith.constant 10 : index
    %c0_21 = arith.constant 0 : index
    %71 = vector.load %arg2[%c10, %c0_21] : memref<13x128xi32, #tpu.memory_space<vmem>>, vector<1x128xi32>
    %72 = vector.broadcast %71 : vector<1x128xi32> to vector<16x128xi32>
    %73 = arith.cmpi eq, %70, %72 : vector<16x128xi32>
    %74 = arith.extui %73 : vector<16x128xi1> to vector<16x128xi32>
    %75 = arith.sitofp %74 : vector<16x128xi32> to vector<16x128xf32>
    %c120 = arith.constant 120 : index
    %c0_22 = arith.constant 0 : index
    %76 = vector.load %arg5[%c120, %c0_22] : memref<256x128xf32, #tpu.memory_space<vmem>>, vector<16x128xf32>
    tpu.vector_store %arg5[%c120, %c0_22], %75 {strides = array<i32>} : memref<256x128xf32, #tpu.memory_space<vmem>>, vector<16x128xf32>,
    %77 = tpu.iota {dimensions = array<i32: 0>} : vector<16x128xi32>
    %c11 = arith.constant 11 : index
    %c0_23 = arith.constant 0 : index
    %78 = vector.load %arg2[%c11, %c0_23] : memref<13x128xi32, #tpu.memory_space<vmem>>, vector<1x128xi32>
    %79 = vector.broadcast %78 : vector<1x128xi32> to vector<16x128xi32>
    %80 = arith.cmpi eq, %77, %79 : vector<16x128xi32>
    %81 = arith.extui %80 : vector<16x128xi1> to vector<16x128xi32>
    %82 = arith.sitofp %81 : vector<16x128xi32> to vector<16x128xf32>
    %c136 = arith.constant 136 : index
    %c0_24 = arith.constant 0 : index
    %83 = vector.load %arg5[%c136, %c0_24] : memref<256x128xf32, #tpu.memory_space<vmem>>, vector<16x128xf32>
    tpu.vector_store %arg5[%c136, %c0_24], %82 {strides = array<i32>} : memref<256x128xf32, #tpu.memory_space<vmem>>, vector<16x128xf32>,
    %84 = tpu.iota {dimensions = array<i32: 0>} : vector<104x128xi32>
    %c12 = arith.constant 12 : index
    %c0_25 = arith.constant 0 : index
    %85 = vector.load %arg2[%c12, %c0_25] : memref<13x128xi32, #tpu.memory_space<vmem>>, vector<1x128xi32>
    %86 = vector.broadcast %85 : vector<1x128xi32> to vector<104x128xi32>
    %87 = arith.cmpi eq, %84, %86 : vector<104x128xi32>
    %88 = arith.extui %87 : vector<104x128xi1> to vector<104x128xi32>
    %89 = arith.sitofp %88 : vector<104x128xi32> to vector<104x128xf32>
    %c152 = arith.constant 152 : index
    %c0_26 = arith.constant 0 : index
    %90 = vector.load %arg5[%c152, %c0_26] : memref<256x128xf32, #tpu.memory_space<vmem>>, vector<104x128xf32>
    tpu.vector_store %arg5[%c152, %c0_26], %89 {strides = array<i32>} : memref<256x128xf32, #tpu.memory_space<vmem>>, vector<104x128xf32>,
    %c0_27 = arith.constant 0 : index
    %c0_28 = arith.constant 0 : index
    %91 = vector.load %arg3[%c0_27, %c0_28] : memref<16x256xf32, #tpu.memory_space<vmem>>, vector<16x256xf32>
    %c0_29 = arith.constant 0 : index
    %c0_30 = arith.constant 0 : index
    %92 = vector.load %arg5[%c0_29, %c0_30] : memref<256x128xf32, #tpu.memory_space<vmem>>, vector<256x128xf32>
    %cst = arith.constant dense<0.000000e+00> : vector<16x128xf32>
    %93 = tpu.matmul %91, %92, %cst {dimension_numbers = #tpu.dot_dimension_numbers<[1], [0], [0], [1], [0, 0, 1, 1], [], []>, precision = #tpu.contract_precision<fp32>} : vector<16x256xf32>, vector<256x128xf32>, vector<16x128xf32> -> vector<16x128xf32>
    %94 = vector.extract_strided_slice %93 {offsets = [0, 0], sizes = [8, 128], strides = [1, 1]} : vector<16x128xf32> to vector<8x128xf32>
    %95 = vector.extract_strided_slice %93 {offsets = [8, 0], sizes = [1, 128], strides = [1, 1]} : vector<16x128xf32> to vector<1x128xf32>
    %96 = vector.extract_strided_slice %93 {offsets = [9, 0], sizes = [1, 128], strides = [1, 1]} : vector<16x128xf32> to vector<1x128xf32>
    %97 = arith.mulf %94, %94 : vector<8x128xf32>
    %cst_31 = arith.constant dense<0.000000e+00> : vector<128xf32>
    %98 = vector.multi_reduction <add>, %97, %cst_31 [0] : vector<8x128xf32> to vector<128xf32>
    %99 = vector.shape_cast %98 : vector<128xf32> to vector<1x128xf32>
    %100 = arith.subf %99, %95 : vector<1x128xf32>
    %cst_32 = arith.constant 5.000000e-01 : f32
    %101 = vector.broadcast %cst_32 : f32 to vector<1x128xf32>
    %102 = arith.mulf %101, %100 : vector<1x128xf32>
    %c0_33 = arith.constant 0 : index
    %103 = memref.load %arg1[%c0_33] : memref<1xf32, #tpu.memory_space<smem>>
    %104 = vector.broadcast %103 : f32 to vector<1x128xf32>
    %105 = arith.addf %104, %96 : vector<1x128xf32>
    %106 = arith.addf %105, %102 : vector<1x128xf32>
    %cst_34 = arith.constant 0.000000e+00 : f32
    %cst_35 = arith.constant 1.000000e+00 : f32
    %107 = vector.broadcast %cst_34 : f32 to vector<1x128xf32>
    %108 = arith.maximumf %107, %106 : vector<1x128xf32>
    %109 = vector.broadcast %cst_35 : f32 to vector<1x128xf32>
    %110 = arith.minimumf %109, %108 : vector<1x128xf32>
    %c0_36 = arith.constant 0 : index
    %c0_37 = arith.constant 0 : index
    %111 = vector.load %arg4[%c0_36, %c0_37] : memref<1x128xf32, #tpu.memory_space<vmem>>, vector<1x128xf32>
    tpu.vector_store %arg4[%c0_36, %c0_37], %110 {strides = array<i32>} : memref<1x128xf32, #tpu.memory_space<vmem>>, vector<1x128xf32>,
    return
  }
  func.func @transform_0(%arg0: i32) -> i32 {
    %c0_i32 = arith.constant 0 : i32
    %c0_i32_0 = arith.constant 0 : i32
    return %c0_i32 : i32
  }
  func.func @transform_1(%arg0: i32) -> (i32, i32) {
    %c0_i32 = arith.constant 0 : i32
    %c0_i32_0 = arith.constant 0 : i32
    return %c0_i32, %arg0 : i32, i32
  }
  func.func @transform_2(%arg0: i32) -> (i32, i32) {
    %c0_i32 = arith.constant 0 : i32
    %c0_i32_0 = arith.constant 0 : i32
    %c0_i32_1 = arith.constant 0 : i32
    return %c0_i32, %c0_i32_0 : i32, i32
  }
  func.func @transform_3(%arg0: i32) -> (i32, i32) {
    %c0_i32 = arith.constant 0 : i32
    %c0_i32_0 = arith.constant 0 : i32
    return %c0_i32, %arg0 : i32, i32
  }
}

</mosaic_0001>

<llo_original>
// kernel: tpu_custom_call.1
$region0: #{tpu_custom_call.1}
  #allocation0 [shape = 'u32[]', space=smem, size = 0x4, offset = 0x4, fixed_abs, tag = 'smem constant byte address 0x4 - core index']
  #allocation1 [shape = 'u32[144,128]{1,0:T(1,128)}', space=vmem, size = 0x12000, scoped, tag = 'internal scratch']
  #allocation2 [shape = 'f32[256,128]{1,0:T(8,128)}', space=vmem, size = 0x20000, scoped, tag = 'scratch operand']
  #allocation3 [shape = 'f32[1]{0:T(128)S(6)}', space=smem, size = 0x200, scoped, tag = 'scoped memory for tpu_custom_call.1']
  %s0 = inlined_call_operand.<no memory space> [shape: f32[1], index: 0, kind: input, shape index: {}]
  %s1 = inlined_call_operand.hbm [shape: s32[13,128], index: 1, kind: input, shape index: {}]
  %s2 = inlined_call_operand.hbm [shape: f32[16,256], index: 2, kind: input, shape index: {}]
  %s3 = inlined_call_operand.hbm [shape: f32[1,128], index: 3, kind: output, shape index: {}]
  %s4 = sld [smem:[#allocation0]]
  $region30: #{tpu_custom_call.1} parent=0
    _
  %s6 = ssub.s32 1, %s4
  %s7 = scalar_select 0, %s6, %s4
  %8 = sst [smem:[#allocation3]] %s0
  $region1: #{tpu_custom_call.1} parent=0
    #allocation4 [shape = 'u8[8192]{0}', space=vmem, size = 0x2000, scoped, tag = 'input window, operand 1, single buffered']
    #allocation5 [shape = 's32[1]{0}', space=sflag, size = 0x4, scoped, tag = 'scoped memory for tpu_custom_call.1']
    #allocation6 [shape = 's32[1]{0}', space=sflag, size = 0x4, scoped, tag = 'scoped memory for tpu_custom_call.1']
    #allocation7 [shape = 'u8[16384]{0}', space=vmem, size = 0x4000, scoped, tag = 'input window, operand 2, single buffered']
    #allocation8 [shape = 's32[1]{0}', space=sflag, size = 0x4, scoped, tag = 'scoped memory for tpu_custom_call.1']
    #allocation9 [shape = 'u8[512]{0}', space=vmem, size = 0x400, scoped, tag = 'output window, operand 0, single buffered']
    %9 = vsyncpa [#allocation5], 0
    %10 = vsyncpa [#allocation8], 0
    %11 = vsyncpa [#allocation6], 0
    // Predicated region
    $region2: #{tpu_custom_call.1} parent=1 // pred_check
      _
    $region3: #{tpu_custom_call.1} parent=1 // pred_check_branch
      %13 = sbr.rel (0) target = $region5
    $region4: #{tpu_custom_call.1} parent=1 // pred_region
      _
    $region5: #{tpu_custom_call.1} parent=1 // pred_fallthru
      _
    // Predicated region
    $region6: #{tpu_custom_call.1} parent=1 // pred_check
      _
    $region7: #{tpu_custom_call.1} parent=1 // pred_check_branch
      %15 = sbr.rel (0) target = $region9
    $region8: #{tpu_custom_call.1} parent=1 // pred_region
      %s17 = ssub.s32 256, 256
      %18 = vsyncadd [#allocation5], %s17
      %s19 = sshll.u32 [#allocation4], 4
      %s20 = int_to_ptr.vmem [resolvable:$true] %s19
      %25 = dma.hbm_to_vmem [thread:$0]  %s1, 256, %s20, [#allocation5], 128, 128, 8
    $region9: #{tpu_custom_call.1} parent=1 // pred_fallthru
      _
    // Predicated region
    $region10: #{tpu_custom_call.1} parent=1 // pred_check
      _
    $region11: #{tpu_custom_call.1} parent=1 // pred_check_branch
      %27 = sbr.rel (0) target = $region13
    $region12: #{tpu_custom_call.1} parent=1 // pred_region
      %s29 = ssub.s32 512, 512
      %30 = vsyncadd [#allocation8], %s29
      %s31 = sshll.u32 [#allocation7], 4
      %s32 = int_to_ptr.vmem [resolvable:$true] %s31
      %37 = dma.hbm_to_vmem [thread:$0]  %s2, 512, %s32, [#allocation8], 256, 256, 16
    $region13: #{tpu_custom_call.1} parent=1 // pred_fallthru
      _
    // Predicated region
    $region14: #{tpu_custom_call.1} parent=1 // pred_check
      _
    $region15: #{tpu_custom_call.1} parent=1 // pred_check_branch
      %39 = sbr.rel (0) target = $region17
    $region16: #{tpu_custom_call.1} parent=1 // pred_region
      %40 = dma.done [#allocation5], 256
    $region17: #{tpu_custom_call.1} parent=1 // pred_fallthru
      _
    // Predicated region
    $region18: #{tpu_custom_call.1} parent=1 // pred_check
      _
    $region19: #{tpu_custom_call.1} parent=1 // pred_check_branch
      %42 = sbr.rel (0) target = $region21
    $region20: #{tpu_custom_call.1} parent=1 // pred_region
      %43 = dma.done [#allocation8], 512
    $region21: #{tpu_custom_call.1} parent=1 // pred_fallthru
      _
    %v44 = vlaneseq
    %v45 = vshrl.u32 %v44, 7
    %v46 = vadd.s32 %v45, 8
    %v47 = vld [vmem:[#allocation4] sm:$0x1]
    %v48 = vlaneseq
    %v49 = vshrl.u32 %v48, 7
    %v50 = vsub.s32 0, %v49
    %v51 = vrot.slane %v47, %v50
    %vm52 = vcmp.eq.s32.totalorder %v45, %v51
    %vm53 = vcmp.eq.s32.totalorder %v46, %v51
    %v54 = vsel %vm52, 1, 0
    %v55 = vsel %vm53, 1, 0
    %v56 = vcvt.s32.f32 %v54
    %v57 = vcvt.s32.f32 %v55
    %58 = vst [vmem:[#allocation2] sm:$0xff] %v56
    %59 = vst [vmem:[#allocation2 + $0x8] sm:$0xff] %v57
    %v60 = vld [vmem:[#allocation4 + $0x1] sm:$0x1]
    %v61 = vlaneseq
    %v62 = vshrl.u32 %v61, 7
    %v63 = vsub.s32 0, %v62
    %v64 = vrot.slane %v60, %v63
    %vm65 = vcmp.eq.s32.totalorder %v45, %v64
    %v66 = vsel %vm65, 1, 0
    %v67 = vcvt.s32.f32 %v66
    %68 = vst [vmem:[#allocation2 + $0x10] sm:$0xff] %v67
    %v69 = vld [vmem:[#allocation4 + $0x2] sm:$0x1]
    %v70 = vlaneseq
    %v71 = vshrl.u32 %v70, 7
    %v72 = vsub.s32 0, %v71
    %v73 = vrot.slane %v69, %v72
    %vm74 = vcmp.eq.s32.totalorder %v45, %v73
    %vm75 = vcmp.eq.s32.totalorder %v46, %v73
    %v76 = vsel %vm74, 1, 0
    %v77 = vsel %vm75, 1, 0
    %v78 = vcvt.s32.f32 %v76
    %v79 = vcvt.s32.f32 %v77
    %80 = vst [vmem:[#allocation2 + $0x18] sm:$0xff] %v78
    %81 = vst [vmem:[#allocation2 + $0x20] sm:$0xff] %v79
    %v82 = vld [vmem:[#allocation4 + $0x3] sm:$0x1]
    %v83 = vlaneseq
    %v84 = vshrl.u32 %v83, 7
    %v85 = vsub.s32 0, %v84
    %v86 = vrot.slane %v82, %v85
    %vm87 = vcmp.eq.s32.totalorder %v45, %v86
    %v88 = vsel %vm87, 1, 0
    %v89 = vcvt.s32.f32 %v88
    %90 = vst [vmem:[#allocation2 + $0x28] sm:$0xff] %v89
    %v91 = vld [vmem:[#allocation4 + $0x4] sm:$0x1]
    %v92 = vlaneseq
    %v93 = vshrl.u32 %v92, 7
    %v94 = vsub.s32 0, %v93
    %v95 = vrot.slane %v91, %v94
    %vm96 = vcmp.eq.s32.totalorder %v45, %v95
    %vm97 = vcmp.eq.s32.totalorder %v46, %v95
    %v98 = vsel %vm96, 1, 0
    %v99 = vsel %vm97, 1, 0
    %v100 = vcvt.s32.f32 %v98
    %v101 = vcvt.s32.f32 %v99
    %102 = vst [vmem:[#allocation2 + $0x30] sm:$0xff] %v100
    %103 = vst [vmem:[#allocation2 + $0x38] sm:$0xff] %v101
    %v104 = vld [vmem:[#allocation4 + $0x5] sm:$0x1]
    %v105 = vlaneseq
    %v106 = vshrl.u32 %v105, 7
    %v107 = vsub.s32 0, %v106
    %v108 = vrot.slane %v104, %v107
    %vm109 = vcmp.eq.s32.totalorder %v45, %v108
    %v110 = vsel %vm109, 1, 0
    %v111 = vcvt.s32.f32 %v110
    %112 = vst [vmem:[#allocation2 + $0x40] sm:$0xff] %v111
    %v113 = vld [vmem:[#allocation4 + $0x6] sm:$0x1]
    %v114 = vlaneseq
    %v115 = vshrl.u32 %v114, 7
    %v116 = vsub.s32 0, %v115
    %v117 = vrot.slane %v113, %v116
    %vm118 = vcmp.eq.s32.totalorder %v45, %v117
    %v119 = vsel %vm118, 1, 0
    %v120 = vcvt.s32.f32 %v119
    %121 = vst [vmem:[#allocation2 + $0x48] sm:$0xff] %v120
    %v122 = vld [vmem:[#allocation4 + $0x7] sm:$0x1]
    %v123 = vlaneseq
    %v124 = vshrl.u32 %v123, 7
    %v125 = vsub.s32 0, %v124
    %v126 = vrot.slane %v122, %v125
    %vm127 = vcmp.eq.s32.totalorder %v45, %v126
    %vm128 = vcmp.eq.s32.totalorder %v46, %v126
    %v129 = vsel %vm127, 1, 0
    %v130 = vsel %vm128, 1, 0
    %v131 = vcvt.s32.f32 %v129
    %v132 = vcvt.s32.f32 %v130
    %133 = vst [vmem:[#allocation2 + $0x50] sm:$0xff] %v131
    %134 = vst [vmem:[#allocation2 + $0x58] sm:$0xff] %v132
    %v135 = vld [vmem:[#allocation4 + $0x8] sm:$0x1]
    %v136 = vlaneseq
    %v137 = vshrl.u32 %v136, 7
    %v138 = vsub.s32 0, %v137
    %v139 = vrot.slane %v135, %v138
    %vm140 = vcmp.eq.s32.totalorder %v45, %v139
    %vm141 = vcmp.eq.s32.totalorder %v46, %v139
    %v142 = vsel %vm140, 1, 0
    %v143 = vsel %vm141, 1, 0
    %v144 = vcvt.s32.f32 %v142
    %v145 = vcvt.s32.f32 %v143
    %146 = vst [vmem:[#allocation2 + $0x60] sm:$0xff] %v144
    %147 = vst [vmem:[#allocation2 + $0x68] sm:$0xff] %v145
    %v148 = vld [vmem:[#allocation4 + $0x9] sm:$0x1]
    %v149 = vlaneseq
    %v150 = vshrl.u32 %v149, 7
    %v151 = vsub.s32 0, %v150
    %v152 = vrot.slane %v148, %v151
    %vm153 = vcmp.eq.s32.totalorder %v45, %v152
    %v154 = vsel %vm153, 1, 0
    %v155 = vcvt.s32.f32 %v154
    %156 = vst [vmem:[#allocation2 + $0x70] sm:$0xff] %v155
    %v157 = vld [vmem:[#allocation4 + $0xa] sm:$0x1]
    %v158 = vlaneseq
    %v159 = vshrl.u32 %v158, 7
    %v160 = vsub.s32 0, %v159
    %v161 = vrot.slane %v157, %v160
    %vm162 = vcmp.eq.s32.totalorder %v45, %v161
    %vm163 = vcmp.eq.s32.totalorder %v46, %v161
    %v164 = vsel %vm162, 1, 0
    %v165 = vsel %vm163, 1, 0
    %v166 = vcvt.s32.f32 %v164
    %v167 = vcvt.s32.f32 %v165
    %168 = vst [vmem:[#allocation2 + $0x78] sm:$0xff] %v166
    %169 = vst [vmem:[#allocation2 + $0x80] sm:$0xff] %v167
    %v170 = vld [vmem:[#allocation4 + $0xb] sm:$0x1]
    %v171 = vlaneseq
    %v172 = vshrl.u32 %v171, 7
    %v173 = vsub.s32 0, %v172
    %v174 = vrot.slane %v170, %v173
    %vm175 = vcmp.eq.s32.totalorder %v45, %v174
    %vm176 = vcmp.eq.s32.totalorder %v46, %v174
    %v177 = vsel %vm175, 1, 0
    %v178 = vsel %vm176, 1, 0
    %v179 = vcvt.s32.f32 %v177
    %v180 = vcvt.s32.f32 %v178
    %181 = vst [vmem:[#allocation2 + $0x88] sm:$0xff] %v179
    %182 = vst [vmem:[#allocation2 + $0x90] sm:$0xff] %v180
    %v183 = vadd.s32 %v45, 16
    %v184 = vadd.s32 %v45, 24
    %v185 = vadd.s32 %v45, 32
    %v186 = vadd.s32 %v45, 40
    %v187 = vadd.s32 %v45, 48
    %v188 = vadd.s32 %v45, 56
    %v189 = vadd.s32 %v45, 64
    %v190 = vadd.s32 %v45, 72
    %v191 = vadd.s32 %v45, 80
    %v192 = vadd.s32 %v45, 88
    %v193 = vadd.s32 %v45, 96
    %v194 = vld [vmem:[#allocation4 + $0xc] sm:$0x1]
    %v195 = vlaneseq
    %v196 = vshrl.u32 %v195, 7
    %v197 = vsub.s32 0, %v196
    %v198 = vrot.slane %v194, %v197
    %vm199 = vcmp.eq.s32.totalorder %v45, %v198
    %vm200 = vcmp.eq.s32.totalorder %v46, %v198
    %vm201 = vcmp.eq.s32.totalorder %v183, %v198
    %vm202 = vcmp.eq.s32.totalorder %v184, %v198
    %vm203 = vcmp.eq.s32.totalorder %v185, %v198
    %vm204 = vcmp.eq.s32.totalorder %v186, %v198
    %vm205 = vcmp.eq.s32.totalorder %v187, %v198
    %vm206 = vcmp.eq.s32.totalorder %v188, %v198
    %vm207 = vcmp.eq.s32.totalorder %v189, %v198
    %vm208 = vcmp.eq.s32.totalorder %v190, %v198
    %vm209 = vcmp.eq.s32.totalorder %v191, %v198
    %vm210 = vcmp.eq.s32.totalorder %v192, %v198
    %vm211 = vcmp.eq.s32.totalorder %v193, %v198
    %v212 = vsel %vm199, 1, 0
    %v213 = vsel %vm200, 1, 0
    %v214 = vsel %vm201, 1, 0
    %v215 = vsel %vm202, 1, 0
    %v216 = vsel %vm203, 1, 0
    %v217 = vsel %vm204, 1, 0
    %v218 = vsel %vm205, 1, 0
    %v219 = vsel %vm206, 1, 0
    %v220 = vsel %vm207, 1, 0
    %v221 = vsel %vm208, 1, 0
    %v222 = vsel %vm209, 1, 0
    %v223 = vsel %vm210, 1, 0
    %v224 = vsel %vm211, 1, 0
    %v225 = vcvt.s32.f32 %v212
    %v226 = vcvt.s32.f32 %v213
    %v227 = vcvt.s32.f32 %v214
    %v228 = vcvt.s32.f32 %v215
    %v229 = vcvt.s32.f32 %v216
    %v230 = vcvt.s32.f32 %v217
    %v231 = vcvt.s32.f32 %v218
    %v232 = vcvt.s32.f32 %v219
    %v233 = vcvt.s32.f32 %v220
    %v234 = vcvt.s32.f32 %v221
    %v235 = vcvt.s32.f32 %v222
    %v236 = vcvt.s32.f32 %v223
    %v237 = vcvt.s32.f32 %v224
    %238 = vst [vmem:[#allocation2 + $0x98] sm:$0xff] %v225
    %239 = vst [vmem:[#allocation2 + $0xa0] sm:$0xff] %v226
    %240 = vst [vmem:[#allocation2 + $0xa8] sm:$0xff] %v227
    %241 = vst [vmem:[#allocation2 + $0xb0] sm:$0xff] %v228
    %242 = vst [vmem:[#allocation2 + $0xb8] sm:$0xff] %v229
    %243 = vst [vmem:[#allocation2 + $0xc0] sm:$0xff] %v230
    %244 = vst [vmem:[#allocation2 + $0xc8] sm:$0xff] %v231
    %245 = vst [vmem:[#allocation2 + $0xd0] sm:$0xff] %v232
    %246 = vst [vmem:[#allocation2 + $0xd8] sm:$0xff] %v233
    %247 = vst [vmem:[#allocation2 + $0xe0] sm:$0xff] %v234
    %248 = vst [vmem:[#allocation2 + $0xe8] sm:$0xff] %v235
    %249 = vst [vmem:[#allocation2 + $0xf0] sm:$0xff] %v236
    %250 = vst [vmem:[#allocation2 + $0xf8] sm:$0xff] %v237
    %v251 = vld [vmem:[#allocation7] sm:$0xff]
    %v252 = vld [vmem:[#allocation7 + $0x8] sm:$0xff]
    %v253 = vld [vmem:[#allocation7 + $0x10] sm:$0xff]
    %v254 = vld [vmem:[#allocation7 + $0x18] sm:$0xff]
    %v255 = vld [vmem:[#allocation2] sm:$0xff]
    %v256 = vld [vmem:[#allocation2 + $0x8] sm:$0xff]
    %v257 = vld [vmem:[#allocation2 + $0x10] sm:$0xff]
    %v258 = vld [vmem:[#allocation2 + $0x18] sm:$0xff]
    %v259 = vld [vmem:[#allocation2 + $0x20] sm:$0xff]
    %v260 = vld [vmem:[#allocation2 + $0x28] sm:$0xff]
    %v261 = vld [vmem:[#allocation2 + $0x30] sm:$0xff]
    %v262 = vld [vmem:[#allocation2 + $0x38] sm:$0xff]
    %v263 = vld [vmem:[#allocation2 + $0x40] sm:$0xff]
    %v264 = vld [vmem:[#allocation2 + $0x48] sm:$0xff]
    %v265 = vld [vmem:[#allocation2 + $0x50] sm:$0xff]
    %v266 = vld [vmem:[#allocation2 + $0x58] sm:$0xff]
    %v267 = vld [vmem:[#allocation2 + $0x60] sm:$0xff]
    %v268 = vld [vmem:[#allocation2 + $0x68] sm:$0xff]
    %v269 = vld [vmem:[#allocation2 + $0x70] sm:$0xff]
    %v270 = vld [vmem:[#allocation2 + $0x78] sm:$0xff]
    %v271 = vld [vmem:[#allocation2 + $0x80] sm:$0xff]
    %v272 = vld [vmem:[#allocation2 + $0x88] sm:$0xff]
    %v273 = vld [vmem:[#allocation2 + $0x90] sm:$0xff]
    %v274 = vld [vmem:[#allocation2 + $0x98] sm:$0xff]
    %v275 = vld [vmem:[#allocation2 + $0xa0] sm:$0xff]
    %v276 = vld [vmem:[#allocation2 + $0xa8] sm:$0xff]
    %v277 = vld [vmem:[#allocation2 + $0xb0] sm:$0xff]
    %v278 = vld [vmem:[#allocation2 + $0xb8] sm:$0xff]
    %v279 = vld [vmem:[#allocation2 + $0xc0] sm:$0xff]
    %v280 = vld [vmem:[#allocation2 + $0xc8] sm:$0xff]
    %v281 = vld [vmem:[#allocation2 + $0xd0] sm:$0xff]
    %v282 = vld [vmem:[#allocation2 + $0xd8] sm:$0xff]
    %v283 = vld [vmem:[#allocation2 + $0xe0] sm:$0xff]
    %v284 = vld [vmem:[#allocation2 + $0xe8] sm:$0xff]
    %v285 = vld [vmem:[#allocation2 + $0xf0] sm:$0xff]
    %v286 = vld [vmem:[#allocation2 + $0xf8] sm:$0xff]
    %287 = vmatprep.subr.mxu0 0.0
    %v288 = vand.u32 %v255, 4294901760
    %289 = vmatpush1.msra.mxu0 %v288
    %290 = vmatprep.subr.mxu0 0.0
    %v291 = vand.u32 %v256, 4294901760
    %292 = vmatpush1.msra.mxu0 %v291
    %293 = vmatprep.subr.mxu0 0.0
    %v294 = vand.u32 %v257, 4294901760
    %295 = vmatpush1.msra.mxu0 %v294
    %296 = vmatprep.subr.mxu0 0.0
    %v297 = vand.u32 %v258, 4294901760
    %298 = vmatpush1.msra.mxu0 %v297
    %299 = vmatprep.subr.mxu0 0.0
    %v300 = vand.u32 %v259, 4294901760
    %301 = vmatpush1.msra.mxu0 %v300
    %302 = vmatprep.subr.mxu0 0.0
    %v303 = vand.u32 %v260, 4294901760
    %304 = vmatpush1.msra.mxu0 %v303
    %305 = vmatprep.subr.mxu0 0.0
    %v306 = vand.u32 %v261, 4294901760
    %307 = vmatpush1.msra.mxu0 %v306
    %308 = vmatprep.subr.mxu0 0.0
    %v309 = vand.u32 %v262, 4294901760
    %310 = vmatpush1.msra.mxu0 %v309
    %311 = vmatprep.subr.mxu0 0.0
    %v312 = vand.u32 %v263, 4294901760
    %313 = vmatpush1.msra.mxu0 %v312
    %314 = vmatprep.subr.mxu0 0.0
    %v315 = vand.u32 %v264, 4294901760
    %316 = vmatpush1.msra.mxu0 %v315
    %317 = vmatprep.subr.mxu0 0.0
    %v318 = vand.u32 %v265, 4294901760
    %319 = vmatpush1.msra.mxu0 %v318
    %320 = vmatprep.subr.mxu0 0.0
    %v321 = vand.u32 %v266, 4294901760
    %322 = vmatpush1.msra.mxu0 %v321
    %323 = vmatprep.subr.mxu0 0.0
    %v324 = vand.u32 %v267, 4294901760
    %325 = vmatpush1.msra.mxu0 %v324
    %326 = vmatprep.subr.mxu0 0.0
    %v327 = vand.u32 %v268, 4294901760
    %328 = vmatpush1.msra.mxu0 %v327
    %329 = vmatprep.subr.mxu0 0.0
    %v330 = vand.u32 %v269, 4294901760
    %331 = vmatpush1.msra.mxu0 %v330
    %332 = vmatprep.subr.mxu0 0.0
    %v333 = vand.u32 %v270, 4294901760
    %334 = vmatpush1.msra.mxu0 %v333
    %335 = vmatprep.subr.mxu0 0.0
    %v336 = vand.u32 %v271, 4294901760
    %337 = vmatpush1.msra.mxu0 %v336
    %338 = vmatprep.subr.mxu0 0.0
    %v339 = vand.u32 %v272, 4294901760
    %340 = vmatpush1.msra.mxu0 %v339
    %341 = vmatprep.subr.mxu0 0.0
    %v342 = vand.u32 %v273, 4294901760
    %343 = vmatpush1.msra.mxu0 %v342
    %344 = vmatprep.subr.mxu0 0.0
    %v345 = vand.u32 %v274, 4294901760
    %346 = vmatpush1.msra.mxu0 %v345
    %347 = vmatprep.subr.mxu0 0.0
    %v348 = vand.u32 %v275, 4294901760
    %349 = vmatpush1.msra.mxu0 %v348
    %350 = vmatprep.subr.mxu0 0.0
    %v351 = vand.u32 %v276, 4294901760
    %352 = vmatpush1.msra.mxu0 %v351
    %353 = vmatprep.subr.mxu0 0.0
    %v354 = vand.u32 %v277, 4294901760
    %355 = vmatpush1.msra.mxu0 %v354
    %356 = vmatprep.subr.mxu0 0.0
    %v357 = vand.u32 %v278, 4294901760
    %358 = vmatpush1.msra.mxu0 %v357
    %359 = vmatprep.subr.mxu0 0.0
    %v360 = vand.u32 %v279, 4294901760
    %361 = vmatpush1.msra.mxu0 %v360
    %362 = vmatprep.subr.mxu0 0.0
    %v363 = vand.u32 %v280, 4294901760
    %364 = vmatpush1.msra.mxu0 %v363
    %365 = vmatprep.subr.mxu0 0.0
    %v366 = vand.u32 %v281, 4294901760
    %367 = vmatpush1.msra.mxu0 %v366
    %368 = vmatprep.subr.mxu0 0.0
    %v369 = vand.u32 %v282, 4294901760
    %370 = vmatpush1.msra.mxu0 %v369
    %371 = vmatprep.subr.mxu0 0.0
    %v372 = vand.u32 %v283, 4294901760
    %373 = vmatpush1.msra.mxu0 %v372
    %374 = vmatprep.subr.mxu0 0.0
    %v375 = vand.u32 %v284, 4294901760
    %376 = vmatpush1.msra.mxu0 %v375
    %377 = vmatprep.subr.mxu0 0.0
    %v378 = vand.u32 %v285, 4294901760
    %379 = vmatpush1.msra.mxu0 %v378
    %380 = vmatprep.subr.mxu0 0.0
    %v381 = vand.u32 %v286, 4294901760
    %382 = vmatpush1.msra.mxu0 %v381
    %v383 = vand.u32 %v252, 4294901760
    %v384 = vsub.f32 %v252, %v383
    %v385 = vand.u32 %v384, 4294901760
    %v386 = vsub.f32 %v384, %v385
    %v387 = vand.u32 %v386, 4294901760
    %388 = vmatprep.mubr.f32.mxu0 %v387
    %v389 = vand.u32 %v251, 4294901760
    %v390 = vsub.f32 %v251, %v389
    %v391 = vand.u32 %v390, 4294901760
    %v392 = vsub.f32 %v390, %v391
    %v393 = vand.u32 %v392, 4294901760
    %394 = vmatmul.mubr.f32.gmra.mrb[0].mxu0 %v393
    %v395 = vpop.f32.mrb[0].mxu0
    %v396 = vadd.f32 0.0, %v395
    %v397 = vpop.f32.mrb[0].mxu0
    %v398 = vand.u32 %v254, 4294901760
    %v399 = vsub.f32 %v254, %v398
    %v400 = vand.u32 %v399, 4294901760
    %v401 = vsub.f32 %v399, %v400
    %v402 = vand.u32 %v401, 4294901760
    %403 = vmatprep.mubr.f32.mxu0 %v402
    %v404 = vand.u32 %v253, 4294901760
    %v405 = vsub.f32 %v253, %v404
    %v406 = vand.u32 %v405, 4294901760
    %v407 = vsub.f32 %v405, %v406
    %v408 = vand.u32 %v407, 4294901760
    %409 = vmatmul.mubr.f32.gmra.mrb[0].mxu0 %v408
    %v410 = vpop.f32.mrb[0].mxu0
    %v411 = vadd.f32 0.0, %v410
    %v412 = vpop.f32.mrb[0].mxu0
    %413 = vdwg.mxu0
    %414 = vmatprep.subr.mxu0 0.0
    %v415 = vand.u32 %v255, 4294901760
    %v416 = vsub.f32 %v255, %v415
    %v417 = vand.u32 %v416, 4294901760
    %v418 = vsub.f32 %v416, %v417
    %v419 = vand.u32 %v418, 4294901760
    %420 = vmatpush1.msra.mxu0 %v419
    %421 = vmatprep.subr.mxu0 0.0
    %v422 = vand.u32 %v256, 4294901760
    %v423 = vsub.f32 %v256, %v422
    %v424 = vand.u32 %v423, 4294901760
    %v425 = vsub.f32 %v423, %v424
    %v426 = vand.u32 %v425, 4294901760
    %427 = vmatpush1.msra.mxu0 %v426
    %428 = vmatprep.subr.mxu0 0.0
    %v429 = vand.u32 %v257, 4294901760
    %v430 = vsub.f32 %v257, %v429
    %v431 = vand.u32 %v430, 4294901760
    %v432 = vsub.f32 %v430, %v431
    %v433 = vand.u32 %v432, 4294901760
    %434 = vmatpush1.msra.mxu0 %v433
    %435 = vmatprep.subr.mxu0 0.0
    %v436 = vand.u32 %v258, 4294901760
    %v437 = vsub.f32 %v258, %v436
    %v438 = vand.u32 %v437, 4294901760
    %v439 = vsub.f32 %v437, %v438
    %v440 = vand.u32 %v439, 4294901760
    %441 = vmatpush1.msra.mxu0 %v440
    %442 = vmatprep.subr.mxu0 0.0
    %v443 = vand.u32 %v259, 4294901760
    %v444 = vsub.f32 %v259, %v443
    %v445 = vand.u32 %v444, 4294901760
    %v446 = vsub.f32 %v444, %v445
    %v447 = vand.u32 %v446, 4294901760
    %448 = vmatpush1.msra.mxu0 %v447
    %449 = vmatprep.subr.mxu0 0.0
    %v450 = vand.u32 %v260, 4294901760
    %v451 = vsub.f32 %v260, %v450
    %v452 = vand.u32 %v451, 4294901760
    %v453 = vsub.f32 %v451, %v452
    %v454 = vand.u32 %v453, 4294901760
    %455 = vmatpush1.msra.mxu0 %v454
    %456 = vmatprep.subr.mxu0 0.0
    %v457 = vand.u32 %v261, 4294901760
    %v458 = vsub.f32 %v261, %v457
    %v459 = vand.u32 %v458, 4294901760
    %v460 = vsub.f32 %v458, %v459
    %v461 = vand.u32 %v460, 4294901760
    %462 = vmatpush1.msra.mxu0 %v461
    %463 = vmatprep.subr.mxu0 0.0
    %v464 = vand.u32 %v262, 4294901760
    %v465 = vsub.f32 %v262, %v464
    %v466 = vand.u32 %v465, 4294901760
    %v467 = vsub.f32 %v465, %v466
    %v468 = vand.u32 %v467, 4294901760
    %469 = vmatpush1.msra.mxu0 %v468
    %470 = vmatprep.subr.mxu0 0.0
    %v471 = vand.u32 %v263, 4294901760
    %v472 = vsub.f32 %v263, %v471
    %v473 = vand.u32 %v472, 4294901760
    %v474 = vsub.f32 %v472, %v473
    %v475 = vand.u32 %v474, 4294901760
    %476 = vmatpush1.msra.mxu0 %v475
    %477 = vmatprep.subr.mxu0 0.0
    %v478 = vand.u32 %v264, 4294901760
    %v479 = vsub.f32 %v264, %v478
    %v480 = vand.u32 %v479, 4294901760
    %v481 = vsub.f32 %v479, %v480
    %v482 = vand.u32 %v481, 4294901760
    %483 = vmatpush1.msra.mxu0 %v482
    %484 = vmatprep.subr.mxu0 0.0
    %v485 = vand.u32 %v265, 4294901760
    %v486 = vsub.f32 %v265, %v485
    %v487 = vand.u32 %v486, 4294901760
    %v488 = vsub.f32 %v486, %v487
    %v489 = vand.u32 %v488, 4294901760
    %490 = vmatpush1.msra.mxu0 %v489
    %491 = vmatprep.subr.mxu0 0.0
    %v492 = vand.u32 %v266, 4294901760
    %v493 = vsub.f32 %v266, %v492
    %v494 = vand.u32 %v493, 4294901760
    %v495 = vsub.f32 %v493, %v494
    %v496 = vand.u32 %v495, 4294901760
    %497 = vmatpush1.msra.mxu0 %v496
    %498 = vmatprep.subr.mxu0 0.0
    %v499 = vand.u32 %v267, 4294901760
    %v500 = vsub.f32 %v267, %v499
    %v501 = vand.u32 %v500, 4294901760
    %v502 = vsub.f32 %v500, %v501
    %v503 = vand.u32 %v502, 4294901760
    %504 = vmatpush1.msra.mxu0 %v503
    %505 = vmatprep.subr.mxu0 0.0
    %v506 = vand.u32 %v268, 4294901760
    %v507 = vsub.f32 %v268, %v506
    %v508 = vand.u32 %v507, 4294901760
    %v509 = vsub.f32 %v507, %v508
    %v510 = vand.u32 %v509, 4294901760
    %511 = vmatpush1.msra.mxu0 %v510
    %512 = vmatprep.subr.mxu0 0.0
    %v513 = vand.u32 %v269, 4294901760
    %v514 = vsub.f32 %v269, %v513
    %v515 = vand.u32 %v514, 4294901760
    %v516 = vsub.f32 %v514, %v515
    %v517 = vand.u32 %v516, 4294901760
    %518 = vmatpush1.msra.mxu0 %v517
    %519 = vmatprep.subr.mxu0 0.0
    %v520 = vand.u32 %v270, 4294901760
    %v521 = vsub.f32 %v270, %v520
    %v522 = vand.u32 %v521, 4294901760
    %v523 = vsub.f32 %v521, %v522
    %v524 = vand.u32 %v523, 4294901760
    %525 = vmatpush1.msra.mxu0 %v524
    %526 = vmatprep.subr.mxu0 0.0
    %v527 = vand.u32 %v271, 4294901760
    %v528 = vsub.f32 %v271, %v527
    %v529 = vand.u32 %v528, 4294901760
    %v530 = vsub.f32 %v528, %v529
    %v531 = vand.u32 %v530, 4294901760
    %532 = vmatpush1.msra.mxu0 %v531
    %533 = vmatprep.subr.mxu0 0.0
    %v534 = vand.u32 %v272, 4294901760
    %v535 = vsub.f32 %v272, %v534
    %v536 = vand.u32 %v535, 4294901760
    %v537 = vsub.f32 %v535, %v536
    %v538 = vand.u32 %v537, 4294901760
    %539 = vmatpush1.msra.mxu0 %v538
    %540 = vmatprep.subr.mxu0 0.0
    %v541 = vand.u32 %v273, 4294901760
    %v542 = vsub.f32 %v273, %v541
    %v543 = vand.u32 %v542, 4294901760
    %v544 = vsub.f32 %v542, %v543
    %v545 = vand.u32 %v544, 4294901760
    %546 = vmatpush1.msra.mxu0 %v545
    %547 = vmatprep.subr.mxu0 0.0
    %v548 = vand.u32 %v274, 4294901760
    %v549 = vsub.f32 %v274, %v548
    %v550 = vand.u32 %v549, 4294901760
    %v551 = vsub.f32 %v549, %v550
    %v552 = vand.u32 %v551, 4294901760
    %553 = vmatpush1.msra.mxu0 %v552
    %554 = vmatprep.subr.mxu0 0.0
    %v555 = vand.u32 %v275, 4294901760
    %v556 = vsub.f32 %v275, %v555
    %v557 = vand.u32 %v556, 4294901760
    %v558 = vsub.f32 %v556, %v557
    %v559 = vand.u32 %v558, 4294901760
    %560 = vmatpush1.msra.mxu0 %v559
    %561 = vmatprep.subr.mxu0 0.0
    %v562 = vand.u32 %v276, 4294901760
    %v563 = vsub.f32 %v276, %v562
    %v564 = vand.u32 %v563, 4294901760
    %v565 = vsub.f32 %v563, %v564
    %v566 = vand.u32 %v565, 4294901760
    %567 = vmatpush1.msra.mxu0 %v566
    %568 = vmatprep.subr.mxu0 0.0
    %v569 = vand.u32 %v277, 4294901760
    %v570 = vsub.f32 %v277, %v569
    %v571 = vand.u32 %v570, 4294901760
    %v572 = vsub.f32 %v570, %v571
    %v573 = vand.u32 %v572, 4294901760
    %574 = vmatpush1.msra.mxu0 %v573
    %575 = vmatprep.subr.mxu0 0.0
    %v576 = vand.u32 %v278, 4294901760
    %v577 = vsub.f32 %v278, %v576
    %v578 = vand.u32 %v577, 4294901760
    %v579 = vsub.f32 %v577, %v578
    %v580 = vand.u32 %v579, 4294901760
    %581 = vmatpush1.msra.mxu0 %v580
    %582 = vmatprep.subr.mxu0 0.0
    %v583 = vand.u32 %v279, 4294901760
    %v584 = vsub.f32 %v279, %v583
    %v585 = vand.u32 %v584, 4294901760
    %v586 = vsub.f32 %v584, %v585
    %v587 = vand.u32 %v586, 4294901760
    %588 = vmatpush1.msra.mxu0 %v587
    %589 = vmatprep.subr.mxu0 0.0
    %v590 = vand.u32 %v280, 4294901760
    %v591 = vsub.f32 %v280, %v590
    %v592 = vand.u32 %v591, 4294901760
    %v593 = vsub.f32 %v591, %v592
    %v594 = vand.u32 %v593, 4294901760
    %595 = vmatpush1.msra.mxu0 %v594
    %596 = vmatprep.subr.mxu0 0.0
    %v597 = vand.u32 %v281, 4294901760
    %v598 = vsub.f32 %v281, %v597
    %v599 = vand.u32 %v598, 4294901760
    %v600 = vsub.f32 %v598, %v599
    %v601 = vand.u32 %v600, 4294901760
    %602 = vmatpush1.msra.mxu0 %v601
    %603 = vmatprep.subr.mxu0 0.0
    %v604 = vand.u32 %v282, 4294901760
    %v605 = vsub.f32 %v282, %v604
    %v606 = vand.u32 %v605, 4294901760
    %v607 = vsub.f32 %v605, %v606
    %v608 = vand.u32 %v607, 4294901760
    %609 = vmatpush1.msra.mxu0 %v608
    %610 = vmatprep.subr.mxu0 0.0
    %v611 = vand.u32 %v283, 4294901760
    %v612 = vsub.f32 %v283, %v611
    %v613 = vand.u32 %v612, 4294901760
    %v614 = vsub.f32 %v612, %v613
    %v615 = vand.u32 %v614, 4294901760
    %616 = vmatpush1.msra.mxu0 %v615
    %617 = vmatprep.subr.mxu0 0.0
    %v618 = vand.u32 %v284, 4294901760
    %v619 = vsub.f32 %v284, %v618
    %v620 = vand.u32 %v619, 4294901760
    %v621 = vsub.f32 %v619, %v620
    %v622 = vand.u32 %v621, 4294901760
    %623 = vmatpush1.msra.mxu0 %v622
    %624 = vmatprep.subr.mxu0 0.0
    %v625 = vand.u32 %v285, 4294901760
    %v626 = vsub.f32 %v285, %v625
    %v627 = vand.u32 %v626, 4294901760
    %v628 = vsub.f32 %v626, %v627
    %v629 = vand.u32 %v628, 4294901760
    %630 = vmatpush1.msra.mxu0 %v629
    %631 = vmatprep.subr.mxu0 0.0
    %v632 = vand.u32 %v286, 4294901760
    %v633 = vsub.f32 %v286, %v632
    %v634 = vand.u32 %v633, 4294901760
    %v635 = vsub.f32 %v633, %v634
    %v636 = vand.u32 %v635, 4294901760
    %637 = vmatpush1.msra.mxu0 %v636
    %v638 = vand.u32 %v252, 4294901760
    %639 = vmatprep.mubr.f32.mxu0 %v638
    %v640 = vand.u32 %v251, 4294901760
    %641 = vmatmul.mubr.f32.gmra.mrb[0].mxu0 %v640
    %v642 = vpop.f32.mrb[0].mxu0
    %v643 = vadd.f32 %v396, %v642
    %v644 = vpop.f32.mrb[0].mxu0
    %v645 = vand.u32 %v254, 4294901760
    %646 = vmatprep.mubr.f32.mxu0 %v645
    %v647 = vand.u32 %v253, 4294901760
    %648 = vmatmul.mubr.f32.gmra.mrb[0].mxu0 %v647
    %v649 = vpop.f32.mrb[0].mxu0
    %v650 = vadd.f32 %v411, %v649
    %v651 = vpop.f32.mrb[0].mxu0
    %652 = vdwg.mxu0
    %653 = vmatprep.subr.mxu0 0.0
    %v654 = vand.u32 %v255, 4294901760
    %v655 = vsub.f32 %v255, %v654
    %656 = vmatpush1.msra.mxu0 %v655
    %657 = vmatprep.subr.mxu0 0.0
    %v658 = vand.u32 %v256, 4294901760
    %v659 = vsub.f32 %v256, %v658
    %660 = vmatpush1.msra.mxu0 %v659
    %661 = vmatprep.subr.mxu0 0.0
    %v662 = vand.u32 %v257, 4294901760
    %v663 = vsub.f32 %v257, %v662
    %664 = vmatpush1.msra.mxu0 %v663
    %665 = vmatprep.subr.mxu0 0.0
    %v666 = vand.u32 %v258, 4294901760
    %v667 = vsub.f32 %v258, %v666
    %668 = vmatpush1.msra.mxu0 %v667
    %669 = vmatprep.subr.mxu0 0.0
    %v670 = vand.u32 %v259, 4294901760
    %v671 = vsub.f32 %v259, %v670
    %672 = vmatpush1.msra.mxu0 %v671
    %673 = vmatprep.subr.mxu0 0.0
    %v674 = vand.u32 %v260, 4294901760
    %v675 = vsub.f32 %v260, %v674
    %676 = vmatpush1.msra.mxu0 %v675
    %677 = vmatprep.subr.mxu0 0.0
    %v678 = vand.u32 %v261, 4294901760
    %v679 = vsub.f32 %v261, %v678
    %680 = vmatpush1.msra.mxu0 %v679
    %681 = vmatprep.subr.mxu0 0.0
    %v682 = vand.u32 %v262, 4294901760
    %v683 = vsub.f32 %v262, %v682
    %684 = vmatpush1.msra.mxu0 %v683
    %685 = vmatprep.subr.mxu0 0.0
    %v686 = vand.u32 %v263, 4294901760
    %v687 = vsub.f32 %v263, %v686
    %688 = vmatpush1.msra.mxu0 %v687
    %689 = vmatprep.subr.mxu0 0.0
    %v690 = vand.u32 %v264, 4294901760
    %v691 = vsub.f32 %v264, %v690
    %692 = vmatpush1.msra.mxu0 %v691
    %693 = vmatprep.subr.mxu0 0.0
    %v694 = vand.u32 %v265, 4294901760
    %v695 = vsub.f32 %v265, %v694
    %696 = vmatpush1.msra.mxu0 %v695
    %697 = vmatprep.subr.mxu0 0.0
    %v698 = vand.u32 %v266, 4294901760
    %v699 = vsub.f32 %v266, %v698
    %700 = vmatpush1.msra.mxu0 %v699
    %701 = vmatprep.subr.mxu0 0.0
    %v702 = vand.u32 %v267, 4294901760
    %v703 = vsub.f32 %v267, %v702
    %704 = vmatpush1.msra.mxu0 %v703
    %705 = vmatprep.subr.mxu0 0.0
    %v706 = vand.u32 %v268, 4294901760
    %v707 = vsub.f32 %v268, %v706
    %708 = vmatpush1.msra.mxu0 %v707
    %709 = vmatprep.subr.mxu0 0.0
    %v710 = vand.u32 %v269, 4294901760
    %v711 = vsub.f32 %v269, %v710
    %712 = vmatpush1.msra.mxu0 %v711
    %713 = vmatprep.subr.mxu0 0.0
    %v714 = vand.u32 %v270, 4294901760
    %v715 = vsub.f32 %v270, %v714
    %716 = vmatpush1.msra.mxu0 %v715
    %717 = vmatprep.subr.mxu0 0.0
    %v718 = vand.u32 %v271, 4294901760
    %v719 = vsub.f32 %v271, %v718
    %720 = vmatpush1.msra.mxu0 %v719
    %721 = vmatprep.subr.mxu0 0.0
    %v722 = vand.u32 %v272, 4294901760
    %v723 = vsub.f32 %v272, %v722
    %724 = vmatpush1.msra.mxu0 %v723
    %725 = vmatprep.subr.mxu0 0.0
    %v726 = vand.u32 %v273, 4294901760
    %v727 = vsub.f32 %v273, %v726
    %728 = vmatpush1.msra.mxu0 %v727
    %729 = vmatprep.subr.mxu0 0.0
    %v730 = vand.u32 %v274, 4294901760
    %v731 = vsub.f32 %v274, %v730
    %732 = vmatpush1.msra.mxu0 %v731
    %733 = vmatprep.subr.mxu0 0.0
    %v734 = vand.u32 %v275, 4294901760
    %v735 = vsub.f32 %v275, %v734
    %736 = vmatpush1.msra.mxu0 %v735
    %737 = vmatprep.subr.mxu0 0.0
    %v738 = vand.u32 %v276, 4294901760
    %v739 = vsub.f32 %v276, %v738
    %740 = vmatpush1.msra.mxu0 %v739
    %741 = vmatprep.subr.mxu0 0.0
    %v742 = vand.u32 %v277, 4294901760
    %v743 = vsub.f32 %v277, %v742
    %744 = vmatpush1.msra.mxu0 %v743
    %745 = vmatprep.subr.mxu0 0.0
    %v746 = vand.u32 %v278, 4294901760
    %v747 = vsub.f32 %v278, %v746
    %748 = vmatpush1.msra.mxu0 %v747
    %749 = vmatprep.subr.mxu0 0.0
    %v750 = vand.u32 %v279, 4294901760
    %v751 = vsub.f32 %v279, %v750
    %752 = vmatpush1.msra.mxu0 %v751
    %753 = vmatprep.subr.mxu0 0.0
    %v754 = vand.u32 %v280, 4294901760
    %v755 = vsub.f32 %v280, %v754
    %756 = vmatpush1.msra.mxu0 %v755
    %757 = vmatprep.subr.mxu0 0.0
    %v758 = vand.u32 %v281, 4294901760
    %v759 = vsub.f32 %v281, %v758
    %760 = vmatpush1.msra.mxu0 %v759
    %761 = vmatprep.subr.mxu0 0.0
    %v762 = vand.u32 %v282, 4294901760
    %v763 = vsub.f32 %v282, %v762
    %764 = vmatpush1.msra.mxu0 %v763
    %765 = vmatprep.subr.mxu0 0.0
    %v766 = vand.u32 %v283, 4294901760
    %v767 = vsub.f32 %v283, %v766
    %768 = vmatpush1.msra.mxu0 %v767
    %769 = vmatprep.subr.mxu0 0.0
    %v770 = vand.u32 %v284, 4294901760
    %v771 = vsub.f32 %v284, %v770
    %772 = vmatpush1.msra.mxu0 %v771
    %773 = vmatprep.subr.mxu0 0.0
    %v774 = vand.u32 %v285, 4294901760
    %v775 = vsub.f32 %v285, %v774
    %776 = vmatpush1.msra.mxu0 %v775
    %777 = vmatprep.subr.mxu0 0.0
    %v778 = vand.u32 %v286, 4294901760
    %v779 = vsub.f32 %v286, %v778
    %780 = vmatpush1.msra.mxu0 %v779
    %v781 = vand.u32 %v252, 4294901760
    %v782 = vsub.f32 %v252, %v781
    %783 = vmatprep.mubr.f32.mxu0 %v782
    %v784 = vand.u32 %v251, 4294901760
    %v785 = vsub.f32 %v251, %v784
    %786 = vmatmul.mubr.f32.gmra.mrb[0].mxu0 %v785
    %v787 = vpop.f32.mrb[0].mxu0
    %v788 = vadd.f32 %v643, %v787
    %v789 = vpop.f32.mrb[0].mxu0
    %v790 = vand.u32 %v254, 4294901760
    %v791 = vsub.f32 %v254, %v790
    %792 = vmatprep.mubr.f32.mxu0 %v791
    %v793 = vand.u32 %v253, 4294901760
    %v794 = vsub.f32 %v253, %v793
    %795 = vmatmul.mubr.f32.gmra.mrb[0].mxu0 %v794
    %v796 = vpop.f32.mrb[0].mxu0
    %v797 = vadd.f32 %v650, %v796
    %v798 = vpop.f32.mrb[0].mxu0
    %799 = vdwg.mxu0
    %800 = vmatprep.subr.mxu0 0.0
    %v801 = vand.u32 %v255, 4294901760
    %802 = vmatpush1.msra.mxu0 %v801
    %803 = vmatprep.subr.mxu0 0.0
    %v804 = vand.u32 %v256, 4294901760
    %805 = vmatpush1.msra.mxu0 %v804
    %806 = vmatprep.subr.mxu0 0.0
    %v807 = vand.u32 %v257, 4294901760
    %808 = vmatpush1.msra.mxu0 %v807
    %809 = vmatprep.subr.mxu0 0.0
    %v810 = vand.u32 %v258, 4294901760
    %811 = vmatpush1.msra.mxu0 %v810
    %812 = vmatprep.subr.mxu0 0.0
    %v813 = vand.u32 %v259, 4294901760
    %814 = vmatpush1.msra.mxu0 %v813
    %815 = vmatprep.subr.mxu0 0.0
    %v816 = vand.u32 %v260, 4294901760
    %817 = vmatpush1.msra.mxu0 %v816
    %818 = vmatprep.subr.mxu0 0.0
    %v819 = vand.u32 %v261, 4294901760
    %820 = vmatpush1.msra.mxu0 %v819
    %821 = vmatprep.subr.mxu0 0.0
    %v822 = vand.u32 %v262, 4294901760
    %823 = vmatpush1.msra.mxu0 %v822
    %824 = vmatprep.subr.mxu0 0.0
    %v825 = vand.u32 %v263, 4294901760
    %826 = vmatpush1.msra.mxu0 %v825
    %827 = vmatprep.subr.mxu0 0.0
    %v828 = vand.u32 %v264, 4294901760
    %829 = vmatpush1.msra.mxu0 %v828
    %830 = vmatprep.subr.mxu0 0.0
    %v831 = vand.u32 %v265, 4294901760
    %832 = vmatpush1.msra.mxu0 %v831
    %833 = vmatprep.subr.mxu0 0.0
    %v834 = vand.u32 %v266, 4294901760
    %835 = vmatpush1.msra.mxu0 %v834
    %836 = vmatprep.subr.mxu0 0.0
    %v837 = vand.u32 %v267, 4294901760
    %838 = vmatpush1.msra.mxu0 %v837
    %839 = vmatprep.subr.mxu0 0.0
    %v840 = vand.u32 %v268, 4294901760
    %841 = vmatpush1.msra.mxu0 %v840
    %842 = vmatprep.subr.mxu0 0.0
    %v843 = vand.u32 %v269, 4294901760
    %844 = vmatpush1.msra.mxu0 %v843
    %845 = vmatprep.subr.mxu0 0.0
    %v846 = vand.u32 %v270, 4294901760
    %847 = vmatpush1.msra.mxu0 %v846
    %848 = vmatprep.subr.mxu0 0.0
    %v849 = vand.u32 %v271, 4294901760
    %850 = vmatpush1.msra.mxu0 %v849
    %851 = vmatprep.subr.mxu0 0.0
    %v852 = vand.u32 %v272, 4294901760
    %853 = vmatpush1.msra.mxu0 %v852
    %854 = vmatprep.subr.mxu0 0.0
    %v855 = vand.u32 %v273, 4294901760
    %856 = vmatpush1.msra.mxu0 %v855
    %857 = vmatprep.subr.mxu0 0.0
    %v858 = vand.u32 %v274, 4294901760
    %859 = vmatpush1.msra.mxu0 %v858
    %860 = vmatprep.subr.mxu0 0.0
    %v861 = vand.u32 %v275, 4294901760
    %862 = vmatpush1.msra.mxu0 %v861
    %863 = vmatprep.subr.mxu0 0.0
    %v864 = vand.u32 %v276, 4294901760
    %865 = vmatpush1.msra.mxu0 %v864
    %866 = vmatprep.subr.mxu0 0.0
    %v867 = vand.u32 %v277, 4294901760
    %868 = vmatpush1.msra.mxu0 %v867
    %869 = vmatprep.subr.mxu0 0.0
    %v870 = vand.u32 %v278, 4294901760
    %871 = vmatpush1.msra.mxu0 %v870
    %872 = vmatprep.subr.mxu0 0.0
    %v873 = vand.u32 %v279, 4294901760
    %874 = vmatpush1.msra.mxu0 %v873
    %875 = vmatprep.subr.mxu0 0.0
    %v876 = vand.u32 %v280, 4294901760
    %877 = vmatpush1.msra.mxu0 %v876
    %878 = vmatprep.subr.mxu0 0.0
    %v879 = vand.u32 %v281, 4294901760
    %880 = vmatpush1.msra.mxu0 %v879
    %881 = vmatprep.subr.mxu0 0.0
    %v882 = vand.u32 %v282, 4294901760
    %883 = vmatpush1.msra.mxu0 %v882
    %884 = vmatprep.subr.mxu0 0.0
    %v885 = vand.u32 %v283, 4294901760
    %886 = vmatpush1.msra.mxu0 %v885
    %887 = vmatprep.subr.mxu0 0.0
    %v888 = vand.u32 %v284, 4294901760
    %889 = vmatpush1.msra.mxu0 %v888
    %890 = vmatprep.subr.mxu0 0.0
    %v891 = vand.u32 %v285, 4294901760
    %892 = vmatpush1.msra.mxu0 %v891
    %893 = vmatprep.subr.mxu0 0.0
    %v894 = vand.u32 %v286, 4294901760
    %895 = vmatpush1.msra.mxu0 %v894
    %v896 = vand.u32 %v252, 4294901760
    %v897 = vsub.f32 %v252, %v896
    %v898 = vand.u32 %v897, 4294901760
    %899 = vmatprep.mubr.f32.mxu0 %v898
    %v900 = vand.u32 %v251, 4294901760
    %v901 = vsub.f32 %v251, %v900
    %v902 = vand.u32 %v901, 4294901760
    %903 = vmatmul.mubr.f32.gmra.mrb[0].mxu0 %v902
    %v904 = vpop.f32.mrb[0].mxu0
    %v905 = vadd.f32 %v788, %v904
    %v906 = vpop.f32.mrb[0].mxu0
    %v907 = vand.u32 %v254, 4294901760
    %v908 = vsub.f32 %v254, %v907
    %v909 = vand.u32 %v908, 4294901760
    %910 = vmatprep.mubr.f32.mxu0 %v909
    %v911 = vand.u32 %v253, 4294901760
    %v912 = vsub.f32 %v253, %v911
    %v913 = vand.u32 %v912, 4294901760
    %914 = vmatmul.mubr.f32.gmra.mrb[0].mxu0 %v913
    %v915 = vpop.f32.mrb[0].mxu0
    %v916 = vadd.f32 %v797, %v915
    %v917 = vpop.f32.mrb[0].mxu0
    %918 = vdwg.mxu0
    %919 = vmatprep.subr.mxu0 0.0
    %v920 = vand.u32 %v255, 4294901760
    %v921 = vsub.f32 %v255, %v920
    %v922 = vand.u32 %v921, 4294901760
    %923 = vmatpush1.msra.mxu0 %v922
    %924 = vmatprep.subr.mxu0 0.0
    %v925 = vand.u32 %v256, 4294901760
    %v926 = vsub.f32 %v256, %v925
    %v927 = vand.u32 %v926, 4294901760
    %928 = vmatpush1.msra.mxu0 %v927
    %929 = vmatprep.subr.mxu0 0.0
    %v930 = vand.u32 %v257, 4294901760
    %v931 = vsub.f32 %v257, %v930
    %v932 = vand.u32 %v931, 4294901760
    %933 = vmatpush1.msra.mxu0 %v932
    %934 = vmatprep.subr.mxu0 0.0
    %v935 = vand.u32 %v258, 4294901760
    %v936 = vsub.f32 %v258, %v935
    %v937 = vand.u32 %v936, 4294901760
    %938 = vmatpush1.msra.mxu0 %v937
    %939 = vmatprep.subr.mxu0 0.0
    %v940 = vand.u32 %v259, 4294901760
    %v941 = vsub.f32 %v259, %v940
    %v942 = vand.u32 %v941, 4294901760
    %943 = vmatpush1.msra.mxu0 %v942
    %944 = vmatprep.subr.mxu0 0.0
    %v945 = vand.u32 %v260, 4294901760
    %v946 = vsub.f32 %v260, %v945
    %v947 = vand.u32 %v946, 4294901760
    %948 = vmatpush1.msra.mxu0 %v947
    %949 = vmatprep.subr.mxu0 0.0
    %v950 = vand.u32 %v261, 4294901760
    %v951 = vsub.f32 %v261, %v950
    %v952 = vand.u32 %v951, 4294901760
    %953 = vmatpush1.msra.mxu0 %v952
    %954 = vmatprep.subr.mxu0 0.0
    %v955 = vand.u32 %v262, 4294901760
    %v956 = vsub.f32 %v262, %v955
    %v957 = vand.u32 %v956, 4294901760
    %958 = vmatpush1.msra.mxu0 %v957
    %959 = vmatprep.subr.mxu0 0.0
    %v960 = vand.u32 %v263, 4294901760
    %v961 = vsub.f32 %v263, %v960
    %v962 = vand.u32 %v961, 4294901760
    %963 = vmatpush1.msra.mxu0 %v962
    %964 = vmatprep.subr.mxu0 0.0
    %v965 = vand.u32 %v264, 4294901760
    %v966 = vsub.f32 %v264, %v965
    %v967 = vand.u32 %v966, 4294901760
    %968 = vmatpush1.msra.mxu0 %v967
    %969 = vmatprep.subr.mxu0 0.0
    %v970 = vand.u32 %v265, 4294901760
    %v971 = vsub.f32 %v265, %v970
    %v972 = vand.u32 %v971, 4294901760
    %973 = vmatpush1.msra.mxu0 %v972
    %974 = vmatprep.subr.mxu0 0.0
    %v975 = vand.u32 %v266, 4294901760
    %v976 = vsub.f32 %v266, %v975
    %v977 = vand.u32 %v976, 4294901760
    %978 = vmatpush1.msra.mxu0 %v977
    %979 = vmatprep.subr.mxu0 0.0
    %v980 = vand.u32 %v267, 4294901760
    %v981 = vsub.f32 %v267, %v980
    %v982 = vand.u32 %v981, 4294901760
    %983 = vmatpush1.msra.mxu0 %v982
    %984 = vmatprep.subr.mxu0 0.0
    %v985 = vand.u32 %v268, 4294901760
    %v986 = vsub.f32 %v268, %v985
    %v987 = vand.u32 %v986, 4294901760
    %988 = vmatpush1.msra.mxu0 %v987
    %989 = vmatprep.subr.mxu0 0.0
    %v990 = vand.u32 %v269, 4294901760
    %v991 = vsub.f32 %v269, %v990
    %v992 = vand.u32 %v991, 4294901760
    %993 = vmatpush1.msra.mxu0 %v992
    %994 = vmatprep.subr.mxu0 0.0
    %v995 = vand.u32 %v270, 4294901760
    %v996 = vsub.f32 %v270, %v995
    %v997 = vand.u32 %v996, 4294901760
    %998 = vmatpush1.msra.mxu0 %v997
    %999 = vmatprep.subr.mxu0 0.0
    %v1000 = vand.u32 %v271, 4294901760
    %v1001 = vsub.f32 %v271, %v1000
    %v1002 = vand.u32 %v1001, 4294901760
    %1003 = vmatpush1.msra.mxu0 %v1002
    %1004 = vmatprep.subr.mxu0 0.0
    %v1005 = vand.u32 %v272, 4294901760
    %v1006 = vsub.f32 %v272, %v1005
    %v1007 = vand.u32 %v1006, 4294901760
    %1008 = vmatpush1.msra.mxu0 %v1007
    %1009 = vmatprep.subr.mxu0 0.0
    %v1010 = vand.u32 %v273, 4294901760
    %v1011 = vsub.f32 %v273, %v1010
    %v1012 = vand.u32 %v1011, 4294901760
    %1013 = vmatpush1.msra.mxu0 %v1012
    %1014 = vmatprep.subr.mxu0 0.0
    %v1015 = vand.u32 %v274, 4294901760
    %v1016 = vsub.f32 %v274, %v1015
    %v1017 = vand.u32 %v1016, 4294901760
    %1018 = vmatpush1.msra.mxu0 %v1017
    %1019 = vmatprep.subr.mxu0 0.0
    %v1020 = vand.u32 %v275, 4294901760
    %v1021 = vsub.f32 %v275, %v1020
    %v1022 = vand.u32 %v1021, 4294901760
    %1023 = vmatpush1.msra.mxu0 %v1022
    %1024 = vmatprep.subr.mxu0 0.0
    %v1025 = vand.u32 %v276, 4294901760
    %v1026 = vsub.f32 %v276, %v1025
    %v1027 = vand.u32 %v1026, 4294901760
    %1028 = vmatpush1.msra.mxu0 %v1027
    %1029 = vmatprep.subr.mxu0 0.0
    %v1030 = vand.u32 %v277, 4294901760
    %v1031 = vsub.f32 %v277, %v1030
    %v1032 = vand.u32 %v1031, 4294901760
    %1033 = vmatpush1.msra.mxu0 %v1032
    %1034 = vmatprep.subr.mxu0 0.0
    %v1035 = vand.u32 %v278, 4294901760
    %v1036 = vsub.f32 %v278, %v1035
    %v1037 = vand.u32 %v1036, 4294901760
    %1038 = vmatpush1.msra.mxu0 %v1037
    %1039 = vmatprep.subr.mxu0 0.0
    %v1040 = vand.u32 %v279, 4294901760
    %v1041 = vsub.f32 %v279, %v1040
    %v1042 = vand.u32 %v1041, 4294901760
    %1043 = vmatpush1.msra.mxu0 %v1042
    %1044 = vmatprep.subr.mxu0 0.0
    %v1045 = vand.u32 %v280, 4294901760
    %v1046 = vsub.f32 %v280, %v1045
    %v1047 = vand.u32 %v1046, 4294901760
    %1048 = vmatpush1.msra.mxu0 %v1047
    %1049 = vmatprep.subr.mxu0 0.0
    %v1050 = vand.u32 %v281, 4294901760
    %v1051 = vsub.f32 %v281, %v1050
    %v1052 = vand.u32 %v1051, 4294901760
    %1053 = vmatpush1.msra.mxu0 %v1052
    %1054 = vmatprep.subr.mxu0 0.0
    %v1055 = vand.u32 %v282, 4294901760
    %v1056 = vsub.f32 %v282, %v1055
    %v1057 = vand.u32 %v1056, 4294901760
    %1058 = vmatpush1.msra.mxu0 %v1057
    %1059 = vmatprep.subr.mxu0 0.0
    %v1060 = vand.u32 %v283, 4294901760
    %v1061 = vsub.f32 %v283, %v1060
    %v1062 = vand.u32 %v1061, 4294901760
    %1063 = vmatpush1.msra.mxu0 %v1062
    %1064 = vmatprep.subr.mxu0 0.0
    %v1065 = vand.u32 %v284, 4294901760
    %v1066 = vsub.f32 %v284, %v1065
    %v1067 = vand.u32 %v1066, 4294901760
    %1068 = vmatpush1.msra.mxu0 %v1067
    %1069 = vmatprep.subr.mxu0 0.0
    %v1070 = vand.u32 %v285, 4294901760
    %v1071 = vsub.f32 %v285, %v1070
    %v1072 = vand.u32 %v1071, 4294901760
    %1073 = vmatpush1.msra.mxu0 %v1072
    %1074 = vmatprep.subr.mxu0 0.0
    %v1075 = vand.u32 %v286, 4294901760
    %v1076 = vsub.f32 %v286, %v1075
    %v1077 = vand.u32 %v1076, 4294901760
    %1078 = vmatpush1.msra.mxu0 %v1077
    %v1079 = vand.u32 %v252, 4294901760
    %1080 = vmatprep.mubr.f32.mxu0 %v1079
    %v1081 = vand.u32 %v251, 4294901760
    %1082 = vmatmul.mubr.f32.gmra.mrb[0].mxu0 %v1081
    %v1083 = vpop.f32.mrb[0].mxu0
    %v1084 = vadd.f32 %v905, %v1083
    %v1085 = vpop.f32.mrb[0].mxu0
    %v1086 = vand.u32 %v254, 4294901760
    %1087 = vmatprep.mubr.f32.mxu0 %v1086
    %v1088 = vand.u32 %v253, 4294901760
    %1089 = vmatmul.mubr.f32.gmra.mrb[0].mxu0 %v1088
    %v1090 = vpop.f32.mrb[0].mxu0
    %v1091 = vadd.f32 %v916, %v1090
    %v1092 = vpop.f32.mrb[0].mxu0
    %1093 = vdwg.mxu0
    %1094 = vmatprep.subr.mxu0 0.0
    %v1095 = vand.u32 %v255, 4294901760
    %1096 = vmatpush1.msra.mxu0 %v1095
    %1097 = vmatprep.subr.mxu0 0.0
    %v1098 = vand.u32 %v256, 4294901760
    %1099 = vmatpush1.msra.mxu0 %v1098
    %1100 = vmatprep.subr.mxu0 0.0
    %v1101 = vand.u32 %v257, 4294901760
    %1102 = vmatpush1.msra.mxu0 %v1101
    %1103 = vmatprep.subr.mxu0 0.0
    %v1104 = vand.u32 %v258, 4294901760
    %1105 = vmatpush1.msra.mxu0 %v1104
    %1106 = vmatprep.subr.mxu0 0.0
    %v1107 = vand.u32 %v259, 4294901760
    %1108 = vmatpush1.msra.mxu0 %v1107
    %1109 = vmatprep.subr.mxu0 0.0
    %v1110 = vand.u32 %v260, 4294901760
    %1111 = vmatpush1.msra.mxu0 %v1110
    %1112 = vmatprep.subr.mxu0 0.0
    %v1113 = vand.u32 %v261, 4294901760
    %1114 = vmatpush1.msra.mxu0 %v1113
    %1115 = vmatprep.subr.mxu0 0.0
    %v1116 = vand.u32 %v262, 4294901760
    %1117 = vmatpush1.msra.mxu0 %v1116
    %1118 = vmatprep.subr.mxu0 0.0
    %v1119 = vand.u32 %v263, 4294901760
    %1120 = vmatpush1.msra.mxu0 %v1119
    %1121 = vmatprep.subr.mxu0 0.0
    %v1122 = vand.u32 %v264, 4294901760
    %1123 = vmatpush1.msra.mxu0 %v1122
    %1124 = vmatprep.subr.mxu0 0.0
    %v1125 = vand.u32 %v265, 4294901760
    %1126 = vmatpush1.msra.mxu0 %v1125
    %1127 = vmatprep.subr.mxu0 0.0
    %v1128 = vand.u32 %v266, 4294901760
    %1129 = vmatpush1.msra.mxu0 %v1128
    %1130 = vmatprep.subr.mxu0 0.0
    %v1131 = vand.u32 %v267, 4294901760
    %1132 = vmatpush1.msra.mxu0 %v1131
    %1133 = vmatprep.subr.mxu0 0.0
    %v1134 = vand.u32 %v268, 4294901760
    %1135 = vmatpush1.msra.mxu0 %v1134
    %1136 = vmatprep.subr.mxu0 0.0
    %v1137 = vand.u32 %v269, 4294901760
    %1138 = vmatpush1.msra.mxu0 %v1137
    %1139 = vmatprep.subr.mxu0 0.0
    %v1140 = vand.u32 %v270, 4294901760
    %1141 = vmatpush1.msra.mxu0 %v1140
    %1142 = vmatprep.subr.mxu0 0.0
    %v1143 = vand.u32 %v271, 4294901760
    %1144 = vmatpush1.msra.mxu0 %v1143
    %1145 = vmatprep.subr.mxu0 0.0
    %v1146 = vand.u32 %v272, 4294901760
    %1147 = vmatpush1.msra.mxu0 %v1146
    %1148 = vmatprep.subr.mxu0 0.0
    %v1149 = vand.u32 %v273, 4294901760
    %1150 = vmatpush1.msra.mxu0 %v1149
    %1151 = vmatprep.subr.mxu0 0.0
    %v1152 = vand.u32 %v274, 4294901760
    %1153 = vmatpush1.msra.mxu0 %v1152
    %1154 = vmatprep.subr.mxu0 0.0
    %v1155 = vand.u32 %v275, 4294901760
    %1156 = vmatpush1.msra.mxu0 %v1155
    %1157 = vmatprep.subr.mxu0 0.0
    %v1158 = vand.u32 %v276, 4294901760
    %1159 = vmatpush1.msra.mxu0 %v1158
    %1160 = vmatprep.subr.mxu0 0.0
    %v1161 = vand.u32 %v277, 4294901760
    %1162 = vmatpush1.msra.mxu0 %v1161
    %1163 = vmatprep.subr.mxu0 0.0
    %v1164 = vand.u32 %v278, 4294901760
    %1165 = vmatpush1.msra.mxu0 %v1164
    %1166 = vmatprep.subr.mxu0 0.0
    %v1167 = vand.u32 %v279, 4294901760
    %1168 = vmatpush1.msra.mxu0 %v1167
    %1169 = vmatprep.subr.mxu0 0.0
    %v1170 = vand.u32 %v280, 4294901760
    %1171 = vmatpush1.msra.mxu0 %v1170
    %1172 = vmatprep.subr.mxu0 0.0
    %v1173 = vand.u32 %v281, 4294901760
    %1174 = vmatpush1.msra.mxu0 %v1173
    %1175 = vmatprep.subr.mxu0 0.0
    %v1176 = vand.u32 %v282, 4294901760
    %1177 = vmatpush1.msra.mxu0 %v1176
    %1178 = vmatprep.subr.mxu0 0.0
    %v1179 = vand.u32 %v283, 4294901760
    %1180 = vmatpush1.msra.mxu0 %v1179
    %1181 = vmatprep.subr.mxu0 0.0
    %v1182 = vand.u32 %v284, 4294901760
    %1183 = vmatpush1.msra.mxu0 %v1182
    %1184 = vmatprep.subr.mxu0 0.0
    %v1185 = vand.u32 %v285, 4294901760
    %1186 = vmatpush1.msra.mxu0 %v1185
    %1187 = vmatprep.subr.mxu0 0.0
    %v1188 = vand.u32 %v286, 4294901760
    %1189 = vmatpush1.msra.mxu0 %v1188
    %v1190 = vand.u32 %v252, 4294901760
    %1191 = vmatprep.mubr.f32.mxu0 %v1190
    %v1192 = vand.u32 %v251, 4294901760
    %1193 = vmatmul.mubr.f32.gmra.mrb[0].mxu0 %v1192
    %v1194 = vpop.f32.mrb[0].mxu0
    %v1195 = vadd.f32 %v1084, %v1194
    %v1196 = vpop.f32.mrb[0].mxu0
    %v1197 = vand.u32 %v254, 4294901760
    %1198 = vmatprep.mubr.f32.mxu0 %v1197
    %v1199 = vand.u32 %v253, 4294901760
    %1200 = vmatmul.mubr.f32.gmra.mrb[0].mxu0 %v1199
    %v1201 = vpop.f32.mrb[0].mxu0
    %v1202 = vadd.f32 %v1091, %v1201
    %v1203 = vpop.f32.mrb[0].mxu0
    %1204 = vdwg.mxu0
    %v1205 = vmul.f32 %v1195, %v1195
    %v1206 = vrot.slane %v1205, 4
    %v1207 = vadd.f32 %v1205, %v1206
    %v1208 = vrot.slane %v1207, 2
    %v1209 = vadd.f32 %v1207, %v1208
    %v1210 = vrot.slane %v1209, 1
    %v1211 = vadd.f32 %v1209, %v1210
    %v1212 = vsub.f32 %v1211, %v1202
    %v1213 = vmul.f32 %v1212, 0.5
    %s1214 = sld [smem:[#allocation3]]
    %v1215 = vstv %s1214
    %v1216 = vadd.f32 %v1215, %v1202
    %v1218 = vrot.slane %v1213, 7
    %v1220 = vadd.f32 %v1216, %v1218
    %v1221 = vmax.f32 %v1220, 0.0
    %v1222 = vmin.f32 %v1221, 1.0
    %1223 = vst [vmem:[#allocation9 - $0x1] sm:$0x2] %v1222
    // Predicated region
    $region22: #{tpu_custom_call.1} parent=1 // pred_check
      _
    $region23: #{tpu_custom_call.1} parent=1 // pred_check_branch
      %1225 = sbr.rel (0) target = $region25
    $region24: #{tpu_custom_call.1} parent=1 // pred_region
      %s1227 = ssub.s32 16, 16
      %1228 = vsyncadd [#allocation6], %s1227
      %s1230 = sshll.u32 [#allocation9], 4
      %s1231 = int_to_ptr.vmem [resolvable:$true] %s1230
      %1233 = dma.vmem_to_hbm [thread:$0]  %s1231, 16, %s3, [#allocation6]
    $region25: #{tpu_custom_call.1} parent=1 // pred_fallthru
      _
    // Predicated region
    $region26: #{tpu_custom_call.1} parent=1 // pred_check
      _
    $region27: #{tpu_custom_call.1} parent=1 // pred_check_branch
      %1235 = sbr.rel (0) target = $region29
    $region28: #{tpu_custom_call.1} parent=1 // pred_region
      %1236 = dma.done [#allocation6], 16
    $region29: #{tpu_custom_call.1} parent=1 // pred_fallthru
      _
    %1237 = vsyncpa [#allocation5], 1
    %1238 = vsyncpa [#allocation8], 1
    %1239 = vsyncpa [#allocation6], 1

</llo_original>
